<compile_context>
chip_gen: v6e
topology: v6e:2x2x1
jax: 0.10.0
libtpu: 0.0.40
codegen_flags: <defaults>
</compile_context>

<pallas_src>
import jax
import jax.numpy as jnp
from jax.experimental import pallas as pl
from jax.experimental.pallas import tpu as pltpu


_RELU_FLAGS = (True, True, True, False, True, True, True, True)


def _use_mxu(out_dim, in_dim):
    """Truly tiny layers (12->3, 3->12) stay on the VPU; everything else MXU."""
    return not (out_dim <= 12 and in_dim <= 12)


# ----------------------------- Pallas kernel --------------------------------
def _linear_t(h, w_ref, b_ref, relu):
    """One layer in transposed layout: h [in, TILE_N] -> y [out, TILE_N]."""
    w = w_ref[...]                       # [out, in]  (bf16 for MXU layers)
    b = b_ref[...]                       # [out, 1]   f32
    out_dim, in_dim = w.shape
    tile_n = h.shape[1]

    if _use_mxu(out_dim, in_dim):
        # MXU matmul: bf16 operands, f32 accumulation (review: ~3x fewer MXU
        # passes vs f32 emulation; MXU / vector-extended slot has slack).
        y = jnp.dot(w, h.astype(jnp.bfloat16),
                    preferred_element_type=jnp.float32) + b
    else:
        # Tiny contraction (out<=12, K<=12): unrolled VPU broadcast-MAC.
        # Accumulator is at most [12, tile_n] f32 now that the 3->128 and
        # 12->64 layers run on the MXU, so register pressure stays bounded.
        acc = jnp.broadcast_to(b, (out_dim, tile_n))
        for k in range(in_dim):          # k is a Python int -> static slices
            acc = acc + w[:, k:k + 1] * h[k:k + 1, :]
        y = acc

    return jnp.maximum(y, 0.0) if relu else y


def _autoencoder_kernel(x_ref,
                        w1, b1, w2, b2, w3, b3, w4, b4,   # encoder
                        w5, b5, w6, b6, w7, b7, w8, b8,   # decoder
                        o_ref):
    """Full 8-layer MLP on one [3, TILE_N] batch tile (feature-major)."""
    h = x_ref[...]                       # [3, TILE_N] f32
    layers = ((w1, b1), (w2, b2), (w3, b3), (w4, b4),
              (w5, b5), (w6, b6), (w7, b7), (w8, b8))
    for (w_ref, b_ref), relu in zip(layers, _RELU_FLAGS):
        h = _linear_t(h, w_ref, b_ref, relu)
    o_ref[...] = h.astype(o_ref.dtype)   # [3, TILE_N], lane-dense store


# ------------------------------ wrapper --------------------------------------
def _pick_tile_n(n, requested):
    """Round to a multiple of 128; cap so the grid gets >=2 steps when possible
    (two v7x TensorCores under the 'parallel' batch axis)."""
    t = max(128, (int(requested) // 128) * 128)
    half = ((-(-n // 2)) + 127) // 128 * 128     # ceil(n/2) rounded up to 128
    return max(128, min(t, half))


def autoencoder_forward(x, params, *, tile_n=2048, feature_major=False):
    """x: [N, 3] f32 (or [3, N] if feature_major).  params: [(W [out,in], b [out,1])]*8."""
    if feature_major:
        xt = x
    else:
        n_rows, f_in = x.shape
        assert f_in == 3
        xt = x.T                                  # [3, N]
    f, n = xt.shape
    assert f == 3

    tn = _pick_tile_n(n, tile_n)
    grid = (pl.cdiv(n, tn),)                      # ragged last block is masked

    # Pre-cast MXU-layer weights to bf16 once (wrapper side); biases stay f32.
    flat = []
    for w, b in params:
        out_dim, in_dim = w.shape
        wk = w.astype(jnp.bfloat16) if _use_mxu(out_dim, in_dim) \
            else w.astype(jnp.float32)
        flat.extend([wk, b.astype(jnp.float32)])

    # Weights / biases: full-array blocks, same block index every step
    # -> fetched once, VMEM-resident across the whole grid.
    resident = lambda a: pl.BlockSpec(a.shape, lambda i: (0, 0))

    in_specs = [pl.BlockSpec((3, tn), lambda i: (0, i))] \
             + [resident(a) for a in flat]
    out_spec = pl.BlockSpec((3, tn), lambda i: (0, i))

    out_t = pl.pallas_call(
        _autoencoder_kernel,
        out_shape=jax.ShapeDtypeStruct((3, n), jnp.float32),
        grid=grid,
        in_specs=in_specs,
        out_specs=out_spec,
        compiler_params=pltpu.CompilerParams(
            dimension_semantics=("parallel",),      # megacore sharding on v7x
            vmem_limit_bytes=32 * 1024 * 1024,
        ),
    )(xt, *flat)

    return out_t if feature_major else out_t.T     # back to [N, 3]


# ------------------------ deterministic parameter init -----------------------
def init_params(key):
    """PyTorch nn.Linear default init: U(-1/sqrt(fan_in), 1/sqrt(fan_in)).
    W in PyTorch layout [out, in]; b as [out, 1] for lane-broadcast."""
    dims = [(3, 128), (128, 64), (64, 12), (12, 3),      # encoder (in, out)
            (3, 12), (12, 64), (64, 128), (128, 3)]      # decoder
    params = []
    for (fan_in, fan_out) in dims:
        key, kw, kb = jax.random.split(key, 3)
        bound = 1.0 / jnp.sqrt(fan_in)
        w = jax.random.uniform(kw, (fan_out, fan_in), jnp.float32, -bound, bound)
        b = jax.random.uniform(kb, (fan_out, 1), jnp.float32, -bound, bound)
        params.append((w, b))
    return params


# -------------------------- pure-JAX reference --------------------------------
def reference_forward(x, params):
    """Matches the kernel's numerics: bf16 operands on MXU layers, f32 accum."""
    h = x
    for (w, b), relu in zip(params, _RELU_FLAGS):
        out_dim, in_dim = w.shape
        if _use_mxu(out_dim, in_dim):
            y = jnp.dot(h.astype(jnp.bfloat16), w.astype(jnp.bfloat16).T,
                        preferred_element_type=jnp.float32) + b[:, 0]
        else:
            y = h @ w.T + b[:, 0]
        h = jnp.maximum(y, 0.0) if relu else y
    return h


if __name__ == "__main__":
    key = jax.random.PRNGKey(0)
    kx, kp = jax.random.split(key)

    N = 1000                        # exercises a 2-step grid + ragged final block
    x = jax.random.normal(kx, (N, 3), jnp.float32)
    params = init_params(kp)

    out = autoencoder_forward(x, params)
    out = jax.block_until_ready(out)

    ref = reference_forward(x, params)
    assert out.shape == (N, 3)
    assert bool(jnp.allclose(out, ref, atol=1e-3, rtol=1e-3)), "mismatch vs reference"

    print("KERNEL_OK")
</pallas_src>

<mosaic_0001>
module attributes {stable_mosaic.version = 11 : i64} {
  func.func @_autoencoder_kernel(%arg0: i32, %arg1: memref<3x512xf32, #tpu.memory_space<vmem>>, %arg2: memref<128x3xbf16, #tpu.memory_space<vmem>>, %arg3: memref<128x1xf32, #tpu.memory_space<vmem>>, %arg4: memref<64x128xbf16, #tpu.memory_space<vmem>>, %arg5: memref<64x1xf32, #tpu.memory_space<vmem>>, %arg6: memref<12x64xbf16, #tpu.memory_space<vmem>>, %arg7: memref<12x1xf32, #tpu.memory_space<vmem>>, %arg8: memref<3x12xf32, #tpu.memory_space<vmem>>, %arg9: memref<3x1xf32, #tpu.memory_space<vmem>>, %arg10: memref<12x3xf32, #tpu.memory_space<vmem>>, %arg11: memref<12x1xf32, #tpu.memory_space<vmem>>, %arg12: memref<64x12xbf16, #tpu.memory_space<vmem>>, %arg13: memref<64x1xf32, #tpu.memory_space<vmem>>, %arg14: memref<128x64xbf16, #tpu.memory_space<vmem>>, %arg15: memref<128x1xf32, #tpu.memory_space<vmem>>, %arg16: memref<3x128xbf16, #tpu.memory_space<vmem>>, %arg17: memref<3x1xf32, #tpu.memory_space<vmem>>, %arg18: memref<3x512xf32, #tpu.memory_space<vmem>>) attributes {dimension_semantics = [#tpu.dimension_semantics<parallel>], iteration_bounds = array<i64: 2>, scalar_prefetch = 0 : i64, scratch_operands = 0 : i64, tpu.core_type = #tpu.core_type<tc>, window_params = [{transform_indices = @transform_0, window_bounds = array<i64: 3, 512>}, {pipeline_mode = #tpu.pipeline_mode<synchronous>, transform_indices = @transform_1, window_bounds = array<i64: 128, 3>}, {pipeline_mode = #tpu.pipeline_mode<synchronous>, transform_indices = @transform_2, window_bounds = array<i64: 128, 1>}, {pipeline_mode = #tpu.pipeline_mode<synchronous>, transform_indices = @transform_3, window_bounds = array<i64: 64, 128>}, {pipeline_mode = #tpu.pipeline_mode<synchronous>, transform_indices = @transform_4, window_bounds = array<i64: 64, 1>}, {pipeline_mode = #tpu.pipeline_mode<synchronous>, transform_indices = @transform_5, window_bounds = array<i64: 12, 64>}, {pipeline_mode = #tpu.pipeline_mode<synchronous>, transform_indices = @transform_6, window_bounds = array<i64: 12, 1>}, {pipeline_mode = #tpu.pipeline_mode<synchronous>, transform_indices = @transform_7, window_bounds = array<i64: 3, 12>}, {pipeline_mode = #tpu.pipeline_mode<synchronous>, transform_indices = @transform_8, window_bounds = array<i64: 3, 1>}, {pipeline_mode = #tpu.pipeline_mode<synchronous>, transform_indices = @transform_9, window_bounds = array<i64: 12, 3>}, {pipeline_mode = #tpu.pipeline_mode<synchronous>, transform_indices = @transform_10, window_bounds = array<i64: 12, 1>}, {pipeline_mode = #tpu.pipeline_mode<synchronous>, transform_indices = @transform_11, window_bounds = array<i64: 64, 12>}, {pipeline_mode = #tpu.pipeline_mode<synchronous>, transform_indices = @transform_12, window_bounds = array<i64: 64, 1>}, {pipeline_mode = #tpu.pipeline_mode<synchronous>, transform_indices = @transform_13, window_bounds = array<i64: 128, 64>}, {pipeline_mode = #tpu.pipeline_mode<synchronous>, transform_indices = @transform_14, window_bounds = array<i64: 128, 1>}, {pipeline_mode = #tpu.pipeline_mode<synchronous>, transform_indices = @transform_15, window_bounds = array<i64: 3, 128>}, {pipeline_mode = #tpu.pipeline_mode<synchronous>, transform_indices = @transform_16, window_bounds = array<i64: 3, 1>}, {transform_indices = @transform_17, window_bounds = array<i64: 3, 512>}]} {
    %c0 = arith.constant 0 : index
    %c0_0 = arith.constant 0 : index
    %0 = vector.load %arg1[%c0, %c0_0] : memref<3x512xf32, #tpu.memory_space<vmem>>, vector<3x512xf32>
    %c0_1 = arith.constant 0 : index
    %c0_2 = arith.constant 0 : index
    %1 = vector.load %arg2[%c0_1, %c0_2] : memref<128x3xbf16, #tpu.memory_space<vmem>>, vector<128x3xbf16>
    %c0_3 = arith.constant 0 : index
    %c0_4 = arith.constant 0 : index
    %2 = vector.load %arg3[%c0_3, %c0_4] : memref<128x1xf32, #tpu.memory_space<vmem>>, vector<128x1xf32>
    %3 = arith.truncf %0 : vector<3x512xf32> to vector<3x512xbf16>
    %cst = arith.constant dense<0.000000e+00> : vector<128x512xf32>
    %4 = tpu.matmul %1, %3, %cst {dimension_numbers = #tpu.dot_dimension_numbers<[1], [0], [0], [1], [0, 0, 1, 1], [], []>} : vector<128x3xbf16>, vector<3x512xbf16>, vector<128x512xf32> -> vector<128x512xf32>
    %5 = vector.broadcast %2 : vector<128x1xf32> to vector<128x512xf32>
    %6 = arith.addf %4, %5 : vector<128x512xf32>
    %cst_5 = arith.constant 0.000000e+00 : f32
    %7 = vector.broadcast %cst_5 : f32 to vector<128x512xf32>
    %8 = arith.maximumf %6, %7 : vector<128x512xf32>
    %c0_6 = arith.constant 0 : index
    %c0_7 = arith.constant 0 : index
    %9 = vector.load %arg4[%c0_6, %c0_7] : memref<64x128xbf16, #tpu.memory_space<vmem>>, vector<64x128xbf16>
    %c0_8 = arith.constant 0 : index
    %c0_9 = arith.constant 0 : index
    %10 = vector.load %arg5[%c0_8, %c0_9] : memref<64x1xf32, #tpu.memory_space<vmem>>, vector<64x1xf32>
    %11 = arith.truncf %8 : vector<128x512xf32> to vector<128x512xbf16>
    %cst_10 = arith.constant dense<0.000000e+00> : vector<64x512xf32>
    %12 = tpu.matmul %9, %11, %cst_10 {dimension_numbers = #tpu.dot_dimension_numbers<[1], [0], [0], [1], [0, 0, 1, 1], [], []>} : vector<64x128xbf16>, vector<128x512xbf16>, vector<64x512xf32> -> vector<64x512xf32>
    %13 = vector.broadcast %10 : vector<64x1xf32> to vector<64x512xf32>
    %14 = arith.addf %12, %13 : vector<64x512xf32>
    %cst_11 = arith.constant 0.000000e+00 : f32
    %15 = vector.broadcast %cst_11 : f32 to vector<64x512xf32>
    %16 = arith.maximumf %14, %15 : vector<64x512xf32>
    %c0_12 = arith.constant 0 : index
    %c0_13 = arith.constant 0 : index
    %17 = vector.load %arg6[%c0_12, %c0_13] : memref<12x64xbf16, #tpu.memory_space<vmem>>, vector<12x64xbf16>
    %c0_14 = arith.constant 0 : index
    %c0_15 = arith.constant 0 : index
    %18 = vector.load %arg7[%c0_14, %c0_15] : memref<12x1xf32, #tpu.memory_space<vmem>>, vector<12x1xf32>
    %19 = arith.truncf %16 : vector<64x512xf32> to vector<64x512xbf16>
    %cst_16 = arith.constant dense<0.000000e+00> : vector<12x512xf32>
    %20 = tpu.matmul %17, %19, %cst_16 {dimension_numbers = #tpu.dot_dimension_numbers<[1], [0], [0], [1], [0, 0, 1, 1], [], []>} : vector<12x64xbf16>, vector<64x512xbf16>, vector<12x512xf32> -> vector<12x512xf32>
    %21 = vector.broadcast %18 : vector<12x1xf32> to vector<12x512xf32>
    %22 = arith.addf %20, %21 : vector<12x512xf32>
    %cst_17 = arith.constant 0.000000e+00 : f32
    %23 = vector.broadcast %cst_17 : f32 to vector<12x512xf32>
    %24 = arith.maximumf %22, %23 : vector<12x512xf32>
    %c0_18 = arith.constant 0 : index
    %c0_19 = arith.constant 0 : index
    %25 = vector.load %arg8[%c0_18, %c0_19] : memref<3x12xf32, #tpu.memory_space<vmem>>, vector<3x12xf32>
    %c0_20 = arith.constant 0 : index
    %c0_21 = arith.constant 0 : index
    %26 = vector.load %arg9[%c0_20, %c0_21] : memref<3x1xf32, #tpu.memory_space<vmem>>, vector<3x1xf32>
    %27 = vector.shape_cast %26 : vector<3x1xf32> to vector<3x1xf32>
    %28 = vector.broadcast %27 : vector<3x1xf32> to vector<3x512xf32>
    %29 = vector.extract_strided_slice %25 {offsets = [0, 0], sizes = [3, 1], strides = [1, 1]} : vector<3x12xf32> to vector<3x1xf32>
    %30 = vector.extract_strided_slice %24 {offsets = [0, 0], sizes = [1, 512], strides = [1, 1]} : vector<12x512xf32> to vector<1x512xf32>
    %31 = vector.broadcast %29 : vector<3x1xf32> to vector<3x512xf32>
    %32 = vector.broadcast %30 : vector<1x512xf32> to vector<3x512xf32>
    %33 = arith.mulf %31, %32 : vector<3x512xf32>
    %34 = arith.addf %28, %33 : vector<3x512xf32>
    %35 = vector.extract_strided_slice %25 {offsets = [0, 1], sizes = [3, 1], strides = [1, 1]} : vector<3x12xf32> to vector<3x1xf32>
    %36 = vector.extract_strided_slice %24 {offsets = [1, 0], sizes = [1, 512], strides = [1, 1]} : vector<12x512xf32> to vector<1x512xf32>
    %37 = vector.broadcast %35 : vector<3x1xf32> to vector<3x512xf32>
    %38 = vector.broadcast %36 : vector<1x512xf32> to vector<3x512xf32>
    %39 = arith.mulf %37, %38 : vector<3x512xf32>
    %40 = arith.addf %34, %39 : vector<3x512xf32>
    %41 = vector.extract_strided_slice %25 {offsets = [0, 2], sizes = [3, 1], strides = [1, 1]} : vector<3x12xf32> to vector<3x1xf32>
    %42 = vector.extract_strided_slice %24 {offsets = [2, 0], sizes = [1, 512], strides = [1, 1]} : vector<12x512xf32> to vector<1x512xf32>
    %43 = vector.broadcast %41 : vector<3x1xf32> to vector<3x512xf32>
    %44 = vector.broadcast %42 : vector<1x512xf32> to vector<3x512xf32>
    %45 = arith.mulf %43, %44 : vector<3x512xf32>
    %46 = arith.addf %40, %45 : vector<3x512xf32>
    %47 = vector.extract_strided_slice %25 {offsets = [0, 3], sizes = [3, 1], strides = [1, 1]} : vector<3x12xf32> to vector<3x1xf32>
    %48 = vector.extract_strided_slice %24 {offsets = [3, 0], sizes = [1, 512], strides = [1, 1]} : vector<12x512xf32> to vector<1x512xf32>
    %49 = vector.broadcast %47 : vector<3x1xf32> to vector<3x512xf32>
    %50 = vector.broadcast %48 : vector<1x512xf32> to vector<3x512xf32>
    %51 = arith.mulf %49, %50 : vector<3x512xf32>
    %52 = arith.addf %46, %51 : vector<3x512xf32>
    %53 = vector.extract_strided_slice %25 {offsets = [0, 4], sizes = [3, 1], strides = [1, 1]} : vector<3x12xf32> to vector<3x1xf32>
    %54 = vector.extract_strided_slice %24 {offsets = [4, 0], sizes = [1, 512], strides = [1, 1]} : vector<12x512xf32> to vector<1x512xf32>
    %55 = vector.broadcast %53 : vector<3x1xf32> to vector<3x512xf32>
    %56 = vector.broadcast %54 : vector<1x512xf32> to vector<3x512xf32>
    %57 = arith.mulf %55, %56 : vector<3x512xf32>
    %58 = arith.addf %52, %57 : vector<3x512xf32>
    %59 = vector.extract_strided_slice %25 {offsets = [0, 5], sizes = [3, 1], strides = [1, 1]} : vector<3x12xf32> to vector<3x1xf32>
    %60 = vector.extract_strided_slice %24 {offsets = [5, 0], sizes = [1, 512], strides = [1, 1]} : vector<12x512xf32> to vector<1x512xf32>
    %61 = vector.broadcast %59 : vector<3x1xf32> to vector<3x512xf32>
    %62 = vector.broadcast %60 : vector<1x512xf32> to vector<3x512xf32>
    %63 = arith.mulf %61, %62 : vector<3x512xf32>
    %64 = arith.addf %58, %63 : vector<3x512xf32>
    %65 = vector.extract_strided_slice %25 {offsets = [0, 6], sizes = [3, 1], strides = [1, 1]} : vector<3x12xf32> to vector<3x1xf32>
    %66 = vector.extract_strided_slice %24 {offsets = [6, 0], sizes = [1, 512], strides = [1, 1]} : vector<12x512xf32> to vector<1x512xf32>
    %67 = vector.broadcast %65 : vector<3x1xf32> to vector<3x512xf32>
    %68 = vector.broadcast %66 : vector<1x512xf32> to vector<3x512xf32>
    %69 = arith.mulf %67, %68 : vector<3x512xf32>
    %70 = arith.addf %64, %69 : vector<3x512xf32>
    %71 = vector.extract_strided_slice %25 {offsets = [0, 7], sizes = [3, 1], strides = [1, 1]} : vector<3x12xf32> to vector<3x1xf32>
    %72 = vector.extract_strided_slice %24 {offsets = [7, 0], sizes = [1, 512], strides = [1, 1]} : vector<12x512xf32> to vector<1x512xf32>
    %73 = vector.broadcast %71 : vector<3x1xf32> to vector<3x512xf32>
    %74 = vector.broadcast %72 : vector<1x512xf32> to vector<3x512xf32>
    %75 = arith.mulf %73, %74 : vector<3x512xf32>
    %76 = arith.addf %70, %75 : vector<3x512xf32>
    %77 = vector.extract_strided_slice %25 {offsets = [0, 8], sizes = [3, 1], strides = [1, 1]} : vector<3x12xf32> to vector<3x1xf32>
    %78 = vector.extract_strided_slice %24 {offsets = [8, 0], sizes = [1, 512], strides = [1, 1]} : vector<12x512xf32> to vector<1x512xf32>
    %79 = vector.broadcast %77 : vector<3x1xf32> to vector<3x512xf32>
    %80 = vector.broadcast %78 : vector<1x512xf32> to vector<3x512xf32>
    %81 = arith.mulf %79, %80 : vector<3x512xf32>
    %82 = arith.addf %76, %81 : vector<3x512xf32>
    %83 = vector.extract_strided_slice %25 {offsets = [0, 9], sizes = [3, 1], strides = [1, 1]} : vector<3x12xf32> to vector<3x1xf32>
    %84 = vector.extract_strided_slice %24 {offsets = [9, 0], sizes = [1, 512], strides = [1, 1]} : vector<12x512xf32> to vector<1x512xf32>
    %85 = vector.broadcast %83 : vector<3x1xf32> to vector<3x512xf32>
    %86 = vector.broadcast %84 : vector<1x512xf32> to vector<3x512xf32>
    %87 = arith.mulf %85, %86 : vector<3x512xf32>
    %88 = arith.addf %82, %87 : vector<3x512xf32>
    %89 = vector.extract_strided_slice %25 {offsets = [0, 10], sizes = [3, 1], strides = [1, 1]} : vector<3x12xf32> to vector<3x1xf32>
    %90 = vector.extract_strided_slice %24 {offsets = [10, 0], sizes = [1, 512], strides = [1, 1]} : vector<12x512xf32> to vector<1x512xf32>
    %91 = vector.broadcast %89 : vector<3x1xf32> to vector<3x512xf32>
    %92 = vector.broadcast %90 : vector<1x512xf32> to vector<3x512xf32>
    %93 = arith.mulf %91, %92 : vector<3x512xf32>
    %94 = arith.addf %88, %93 : vector<3x512xf32>
    %95 = vector.extract_strided_slice %25 {offsets = [0, 11], sizes = [3, 1], strides = [1, 1]} : vector<3x12xf32> to vector<3x1xf32>
    %96 = vector.extract_strided_slice %24 {offsets = [11, 0], sizes = [1, 512], strides = [1, 1]} : vector<12x512xf32> to vector<1x512xf32>
    %97 = vector.broadcast %95 : vector<3x1xf32> to vector<3x512xf32>
    %98 = vector.broadcast %96 : vector<1x512xf32> to vector<3x512xf32>
    %99 = arith.mulf %97, %98 : vector<3x512xf32>
    %100 = arith.addf %94, %99 : vector<3x512xf32>
    %c0_22 = arith.constant 0 : index
    %c0_23 = arith.constant 0 : index
    %101 = vector.load %arg10[%c0_22, %c0_23] : memref<12x3xf32, #tpu.memory_space<vmem>>, vector<12x3xf32>
    %c0_24 = arith.constant 0 : index
    %c0_25 = arith.constant 0 : index
    %102 = vector.load %arg11[%c0_24, %c0_25] : memref<12x1xf32, #tpu.memory_space<vmem>>, vector<12x1xf32>
    %103 = vector.shape_cast %102 : vector<12x1xf32> to vector<12x1xf32>
    %104 = vector.broadcast %103 : vector<12x1xf32> to vector<12x512xf32>
    %105 = vector.extract_strided_slice %101 {offsets = [0, 0], sizes = [12, 1], strides = [1, 1]} : vector<12x3xf32> to vector<12x1xf32>
    %106 = vector.extract_strided_slice %100 {offsets = [0, 0], sizes = [1, 512], strides = [1, 1]} : vector<3x512xf32> to vector<1x512xf32>
    %107 = vector.broadcast %105 : vector<12x1xf32> to vector<12x512xf32>
    %108 = vector.broadcast %106 : vector<1x512xf32> to vector<12x512xf32>
    %109 = arith.mulf %107, %108 : vector<12x512xf32>
    %110 = arith.addf %104, %109 : vector<12x512xf32>
    %111 = vector.extract_strided_slice %101 {offsets = [0, 1], sizes = [12, 1], strides = [1, 1]} : vector<12x3xf32> to vector<12x1xf32>
    %112 = vector.extract_strided_slice %100 {offsets = [1, 0], sizes = [1, 512], strides = [1, 1]} : vector<3x512xf32> to vector<1x512xf32>
    %113 = vector.broadcast %111 : vector<12x1xf32> to vector<12x512xf32>
    %114 = vector.broadcast %112 : vector<1x512xf32> to vector<12x512xf32>
    %115 = arith.mulf %113, %114 : vector<12x512xf32>
    %116 = arith.addf %110, %115 : vector<12x512xf32>
    %117 = vector.extract_strided_slice %101 {offsets = [0, 2], sizes = [12, 1], strides = [1, 1]} : vector<12x3xf32> to vector<12x1xf32>
    %118 = vector.extract_strided_slice %100 {offsets = [2, 0], sizes = [1, 512], strides = [1, 1]} : vector<3x512xf32> to vector<1x512xf32>
    %119 = vector.broadcast %117 : vector<12x1xf32> to vector<12x512xf32>
    %120 = vector.broadcast %118 : vector<1x512xf32> to vector<12x512xf32>
    %121 = arith.mulf %119, %120 : vector<12x512xf32>
    %122 = arith.addf %116, %121 : vector<12x512xf32>
    %cst_26 = arith.constant 0.000000e+00 : f32
    %123 = vector.broadcast %cst_26 : f32 to vector<12x512xf32>
    %124 = arith.maximumf %122, %123 : vector<12x512xf32>
    %c0_27 = arith.constant 0 : index
    %c0_28 = arith.constant 0 : index
    %125 = vector.load %arg12[%c0_27, %c0_28] : memref<64x12xbf16, #tpu.memory_space<vmem>>, vector<64x12xbf16>
    %c0_29 = arith.constant 0 : index
    %c0_30 = arith.constant 0 : index
    %126 = vector.load %arg13[%c0_29, %c0_30] : memref<64x1xf32, #tpu.memory_space<vmem>>, vector<64x1xf32>
    %127 = arith.truncf %124 : vector<12x512xf32> to vector<12x512xbf16>
    %cst_31 = arith.constant dense<0.000000e+00> : vector<64x512xf32>
    %128 = tpu.matmul %125, %127, %cst_31 {dimension_numbers = #tpu.dot_dimension_numbers<[1], [0], [0], [1], [0, 0, 1, 1], [], []>} : vector<64x12xbf16>, vector<12x512xbf16>, vector<64x512xf32> -> vector<64x512xf32>
    %129 = vector.broadcast %126 : vector<64x1xf32> to vector<64x512xf32>
    %130 = arith.addf %128, %129 : vector<64x512xf32>
    %cst_32 = arith.constant 0.000000e+00 : f32
    %131 = vector.broadcast %cst_32 : f32 to vector<64x512xf32>
    %132 = arith.maximumf %130, %131 : vector<64x512xf32>
    %c0_33 = arith.constant 0 : index
    %c0_34 = arith.constant 0 : index
    %133 = vector.load %arg14[%c0_33, %c0_34] : memref<128x64xbf16, #tpu.memory_space<vmem>>, vector<128x64xbf16>
    %c0_35 = arith.constant 0 : index
    %c0_36 = arith.constant 0 : index
    %134 = vector.load %arg15[%c0_35, %c0_36] : memref<128x1xf32, #tpu.memory_space<vmem>>, vector<128x1xf32>
    %135 = arith.truncf %132 : vector<64x512xf32> to vector<64x512xbf16>
    %cst_37 = arith.constant dense<0.000000e+00> : vector<128x512xf32>
    %136 = tpu.matmul %133, %135, %cst_37 {dimension_numbers = #tpu.dot_dimension_numbers<[1], [0], [0], [1], [0, 0, 1, 1], [], []>} : vector<128x64xbf16>, vector<64x512xbf16>, vector<128x512xf32> -> vector<128x512xf32>
    %137 = vector.broadcast %134 : vector<128x1xf32> to vector<128x512xf32>
    %138 = arith.addf %136, %137 : vector<128x512xf32>
    %cst_38 = arith.constant 0.000000e+00 : f32
    %139 = vector.broadcast %cst_38 : f32 to vector<128x512xf32>
    %140 = arith.maximumf %138, %139 : vector<128x512xf32>
    %c0_39 = arith.constant 0 : index
    %c0_40 = arith.constant 0 : index
    %141 = vector.load %arg16[%c0_39, %c0_40] : memref<3x128xbf16, #tpu.memory_space<vmem>>, vector<3x128xbf16>
    %c0_41 = arith.constant 0 : index
    %c0_42 = arith.constant 0 : index
    %142 = vector.load %arg17[%c0_41, %c0_42] : memref<3x1xf32, #tpu.memory_space<vmem>>, vector<3x1xf32>
    %143 = arith.truncf %140 : vector<128x512xf32> to vector<128x512xbf16>
    %cst_43 = arith.constant dense<0.000000e+00> : vector<3x512xf32>
    %144 = tpu.matmul %141, %143, %cst_43 {dimension_numbers = #tpu.dot_dimension_numbers<[1], [0], [0], [1], [0, 0, 1, 1], [], []>} : vector<3x128xbf16>, vector<128x512xbf16>, vector<3x512xf32> -> vector<3x512xf32>
    %145 = vector.broadcast %142 : vector<3x1xf32> to vector<3x512xf32>
    %146 = arith.addf %144, %145 : vector<3x512xf32>
    %cst_44 = arith.constant 0.000000e+00 : f32
    %147 = vector.broadcast %cst_44 : f32 to vector<3x512xf32>
    %148 = arith.maximumf %146, %147 : vector<3x512xf32>
    %c0_45 = arith.constant 0 : index
    %c0_46 = arith.constant 0 : index
    %149 = vector.load %arg18[%c0_45, %c0_46] : memref<3x512xf32, #tpu.memory_space<vmem>>, vector<3x512xf32>
    tpu.vector_store %arg18[%c0_45, %c0_46], %148 {strides = array<i32>} : memref<3x512xf32, #tpu.memory_space<vmem>>, vector<3x512xf32>,
    return
  }
  func.func @transform_0(%arg0: i32) -> (i32, i32) {
    %c0_i32 = arith.constant 0 : i32
    %c0_i32_0 = arith.constant 0 : i32
    return %c0_i32, %arg0 : i32, i32
  }
  func.func @transform_1(%arg0: i32) -> (i32, i32) {
    %c0_i32 = arith.constant 0 : i32
    %c0_i32_0 = arith.constant 0 : i32
    %c0_i32_1 = arith.constant 0 : i32
    return %c0_i32, %c0_i32_0 : i32, i32
  }
  func.func @transform_2(%arg0: i32) -> (i32, i32) {
    %c0_i32 = arith.constant 0 : i32
    %c0_i32_0 = arith.constant 0 : i32
    %c0_i32_1 = arith.constant 0 : i32
    return %c0_i32, %c0_i32_0 : i32, i32
  }
  func.func @transform_3(%arg0: i32) -> (i32, i32) {
    %c0_i32 = arith.constant 0 : i32
    %c0_i32_0 = arith.constant 0 : i32
    %c0_i32_1 = arith.constant 0 : i32
    return %c0_i32, %c0_i32_0 : i32, i32
  }
  func.func @transform_4(%arg0: i32) -> (i32, i32) {
    %c0_i32 = arith.constant 0 : i32
    %c0_i32_0 = arith.constant 0 : i32
    %c0_i32_1 = arith.constant 0 : i32
    return %c0_i32, %c0_i32_0 : i32, i32
  }
  func.func @transform_5(%arg0: i32) -> (i32, i32) {
    %c0_i32 = arith.constant 0 : i32
    %c0_i32_0 = arith.constant 0 : i32
    %c0_i32_1 = arith.constant 0 : i32
    return %c0_i32, %c0_i32_0 : i32, i32
  }
  func.func @transform_6(%arg0: i32) -> (i32, i32) {
    %c0_i32 = arith.constant 0 : i32
    %c0_i32_0 = arith.constant 0 : i32
    %c0_i32_1 = arith.constant 0 : i32
    return %c0_i32, %c0_i32_0 : i32, i32
  }
  func.func @transform_7(%arg0: i32) -> (i32, i32) {
    %c0_i32 = arith.constant 0 : i32
    %c0_i32_0 = arith.constant 0 : i32
    %c0_i32_1 = arith.constant 0 : i32
    return %c0_i32, %c0_i32_0 : i32, i32
  }
  func.func @transform_8(%arg0: i32) -> (i32, i32) {
    %c0_i32 = arith.constant 0 : i32
    %c0_i32_0 = arith.constant 0 : i32
    %c0_i32_1 = arith.constant 0 : i32
    return %c0_i32, %c0_i32_0 : i32, i32
  }
  func.func @transform_9(%arg0: i32) -> (i32, i32) {
    %c0_i32 = arith.constant 0 : i32
    %c0_i32_0 = arith.constant 0 : i32
    %c0_i32_1 = arith.constant 0 : i32
    return %c0_i32, %c0_i32_0 : i32, i32
  }
  func.func @transform_10(%arg0: i32) -> (i32, i32) {
    %c0_i32 = arith.constant 0 : i32
    %c0_i32_0 = arith.constant 0 : i32
    %c0_i32_1 = arith.constant 0 : i32
    return %c0_i32, %c0_i32_0 : i32, i32
  }
  func.func @transform_11(%arg0: i32) -> (i32, i32) {
    %c0_i32 = arith.constant 0 : i32
    %c0_i32_0 = arith.constant 0 : i32
    %c0_i32_1 = arith.constant 0 : i32
    return %c0_i32, %c0_i32_0 : i32, i32
  }
  func.func @transform_12(%arg0: i32) -> (i32, i32) {
    %c0_i32 = arith.constant 0 : i32
    %c0_i32_0 = arith.constant 0 : i32
    %c0_i32_1 = arith.constant 0 : i32
    return %c0_i32, %c0_i32_0 : i32, i32
  }
  func.func @transform_13(%arg0: i32) -> (i32, i32) {
    %c0_i32 = arith.constant 0 : i32
    %c0_i32_0 = arith.constant 0 : i32
    %c0_i32_1 = arith.constant 0 : i32
    return %c0_i32, %c0_i32_0 : i32, i32
  }
  func.func @transform_14(%arg0: i32) -> (i32, i32) {
    %c0_i32 = arith.constant 0 : i32
    %c0_i32_0 = arith.constant 0 : i32
    %c0_i32_1 = arith.constant 0 : i32
    return %c0_i32, %c0_i32_0 : i32, i32
  }
  func.func @transform_15(%arg0: i32) -> (i32, i32) {
    %c0_i32 = arith.constant 0 : i32
    %c0_i32_0 = arith.constant 0 : i32
    %c0_i32_1 = arith.constant 0 : i32
    return %c0_i32, %c0_i32_0 : i32, i32
  }
  func.func @transform_16(%arg0: i32) -> (i32, i32) {
    %c0_i32 = arith.constant 0 : i32
    %c0_i32_0 = arith.constant 0 : i32
    %c0_i32_1 = arith.constant 0 : i32
    return %c0_i32, %c0_i32_0 : i32, i32
  }
  func.func @transform_17(%arg0: i32) -> (i32, i32) {
    %c0_i32 = arith.constant 0 : i32
    %c0_i32_0 = arith.constant 0 : i32
    return %c0_i32, %arg0 : i32, i32
  }
}

</mosaic_0001>

<llo_original>
// kernel: tpu_custom_call.1
$region0: #{tpu_custom_call.1}
  #allocation0 [shape = 'u32[]', space=smem, size = 0x4, offset = 0x4, fixed_abs, tag = 'smem constant byte address 0x4 - core index']
  #allocation1 [shape = 'u32[144,128]{1,0:T(1,128)}', space=vmem, size = 0x12000, scoped, tag = 'internal scratch']
  %s0 = inlined_call_operand.vmem [shape: f32[3,1000], index: 0, kind: input, shape index: {}]
  %s1 = inlined_call_operand.vmem [shape: bf16[128,3], index: 1, kind: input, shape index: {}]
  %s2 = inlined_call_operand.vmem [shape: f32[128,1], index: 2, kind: input, shape index: {}]
  %s3 = inlined_call_operand.vmem [shape: bf16[64,128], index: 3, kind: input, shape index: {}]
  %s4 = inlined_call_operand.vmem [shape: f32[64,1], index: 4, kind: input, shape index: {}]
  %s5 = inlined_call_operand.vmem [shape: bf16[12,64], index: 5, kind: input, shape index: {}]
  %s6 = inlined_call_operand.vmem [shape: f32[12,1], index: 6, kind: input, shape index: {}]
  %s7 = inlined_call_operand.vmem [shape: f32[3,12], index: 7, kind: input, shape index: {}]
  %s8 = inlined_call_operand.vmem [shape: f32[3,1], index: 8, kind: input, shape index: {}]
  %s9 = inlined_call_operand.vmem [shape: f32[12,3], index: 9, kind: input, shape index: {}]
  %s10 = inlined_call_operand.vmem [shape: f32[12,1], index: 10, kind: input, shape index: {}]
  %s11 = inlined_call_operand.vmem [shape: bf16[64,12], index: 11, kind: input, shape index: {}]
  %s12 = inlined_call_operand.vmem [shape: f32[64,1], index: 12, kind: input, shape index: {}]
  %s13 = inlined_call_operand.vmem [shape: bf16[128,64], index: 13, kind: input, shape index: {}]
  %s14 = inlined_call_operand.vmem [shape: f32[128,1], index: 14, kind: input, shape index: {}]
  %s15 = inlined_call_operand.vmem [shape: bf16[3,128], index: 15, kind: input, shape index: {}]
  %s16 = inlined_call_operand.vmem [shape: f32[3,1], index: 16, kind: input, shape index: {}]
  %s17 = inlined_call_operand.hbm [shape: f32[3,1000], index: 17, kind: output, shape index: {}]
  %s18 = sld [smem:[#allocation0]]
  $region101: #{tpu_custom_call.1} parent=0
    _
  %s20 = ssub.s32 1, %s18
  %s21 = scalar_select 0, %s20, %s18
  $region1: #{tpu_custom_call.1} parent=0
    #allocation2 [shape = 'u8[16384]{0}', space=vmem, size = 0x4000, scoped, tag = 'output window, operand 0']
    #allocation3 [shape = 's32[2]{0}', space=sflag, size = 0x8, scoped, tag = 'scoped memory for tpu_custom_call.1']
    %22 = vsyncpa [#allocation3], 0
    %s23 = scalar_lea.sflag [#allocation3], 1
    %24 = vsyncpa %s23, 0
    loop: start=0, step=1, limit=4
    $region2: #{tpu_custom_call.1} parent=1 // loop_pre_header
      _
    $region3: #{tpu_custom_call.1} parent=1 // loop_header
      %s26 = sphi 0, %s30
      %p27 = scmp.ge.s32.totalorder %s26, 4
      %s36 = sphi 0, %s38
      %s39 = sphi 0, %s36
      %s40 = sphi 0, %s39
      %s56 = sphi 0, %s40
      %s60 = sphi 0, %s60
      %s62 = sphi 0, %s60
      %s63 = sphi 0, %s62
      %s77 = sphi 0, %s63
      %s81 = sphi 0, %s81
      %s83 = sphi 0, %s81
      %s84 = sphi 0, %s83
      %s98 = sphi 0, %s84
      %s102 = sphi 0, %s102
      %s104 = sphi 0, %s102
      %s105 = sphi 0, %s104
      %s119 = sphi 0, %s105
      %s123 = sphi 0, %s123
      %s125 = sphi 0, %s123
      %s126 = sphi 0, %s125
      %s140 = sphi 0, %s126
      %s144 = sphi 0, %s144
      %s146 = sphi 0, %s144
      %s147 = sphi 0, %s146
      %s161 = sphi 0, %s147
      %s165 = sphi 0, %s165
      %s167 = sphi 0, %s165
      %s168 = sphi 0, %s167
      %s182 = sphi 0, %s168
      %s186 = sphi 0, %s186
      %s188 = sphi 0, %s186
      %s189 = sphi 0, %s188
      %s203 = sphi 0, %s189
      %s207 = sphi 0, %s207
      %s209 = sphi 0, %s207
      %s210 = sphi 0, %s209
      %s224 = sphi 0, %s210
      %s228 = sphi 0, %s228
      %s230 = sphi 0, %s228
      %s231 = sphi 0, %s230
      %s245 = sphi 0, %s231
      %s249 = sphi 0, %s249
      %s251 = sphi 0, %s249
      %s252 = sphi 0, %s251
      %s266 = sphi 0, %s252
      %s270 = sphi 0, %s270
      %s272 = sphi 0, %s270
      %s273 = sphi 0, %s272
      %s287 = sphi 0, %s273
      %s291 = sphi 0, %s291
      %s293 = sphi 0, %s291
      %s294 = sphi 0, %s293
      %s308 = sphi 0, %s294
      %s312 = sphi 0, %s312
      %s314 = sphi 0, %s312
      %s315 = sphi 0, %s314
      %s329 = sphi 0, %s315
      %s333 = sphi 0, %s333
      %s335 = sphi 0, %s333
      %s336 = sphi 0, %s335
      %s350 = sphi 0, %s336
      %s354 = sphi 0, %s354
      %s356 = sphi 0, %s354
      %s357 = sphi 0, %s356
      %s371 = sphi 0, %s357
      %s375 = sphi 0, %s375
      %s377 = sphi 0, %s375
      %s378 = sphi 0, %s377
      %s392 = sphi 0, %s378
      %s398 = sphi 0, %s400
      %s401 = sphi 0, %s398
      %s402 = sphi 0, %s401
      %s418 = sphi 0, %s402
    $region4: #{tpu_custom_call.1} parent=1 // loop_header_branch
      %29 = sbr.rel (%p27) target = $region8
    $region5: #{tpu_custom_call.1} parent=1 // loop_body
      %s31 = ssub.s32 %s26, 1
      %s32 = ssub.s32 %s26, 2
      %s33 = sadd.s32 %s26, 1
      %s34 = ssub.s32 %s26, %s33
      %p35 = scmp.eq.s32.totalorder %s34, 0
      %s37 = sadd.s32 %s36, 1
      %s38 = scalar_select %p35, %s36, %s37
      %p41 = pneg %p35
      %p42 = scmp.eq.s32.totalorder %s26, 1
      %p43 = por %p41, %p42
      %p44 = scmp.ne.s32.totalorder %s36, %s39
      %p45 = scmp.eq.s32.totalorder %s26, 0
      %p46 = por %p44, %p45
      %p47 = scmp.ne.s32.totalorder %s36, %s39
      %p48 = scmp.eq.s32.totalorder %s31, 1
      %p49 = por %p47, %p48
      %p50 = scmp.ne.s32.totalorder %s39, %s40
      %p51 = scmp.eq.s32.totalorder %s31, 0
      %p52 = por %p50, %p51
      %p53 = scmp.ne.s32.totalorder %s39, %s40
      %p54 = scmp.eq.s32.totalorder %s32, 1
      %p55 = por %p53, %p54
      %p57 = scmp.ne.s32.totalorder %s40, %s56
      %p58 = scmp.eq.s32.totalorder %s32, 0
      %p59 = por %p57, %p58
      %s61 = sadd.s32 %s60, 1
      %p64 = scmp.eq.s32.totalorder %s26, 1
      %p65 = scmp.ne.s32.totalorder %s60, %s62
      %p66 = scmp.eq.s32.totalorder %s26, 0
      %p67 = por %p65, %p66
      %p68 = scmp.ne.s32.totalorder %s60, %s62
      %p69 = scmp.eq.s32.totalorder %s31, 1
      %p70 = por %p68, %p69
      %p71 = scmp.ne.s32.totalorder %s62, %s63
      %p72 = scmp.eq.s32.totalorder %s31, 0
      %p73 = por %p71, %p72
      %p74 = scmp.ne.s32.totalorder %s62, %s63
      %p75 = scmp.eq.s32.totalorder %s32, 1
      %p76 = por %p74, %p75
      %p78 = scmp.ne.s32.totalorder %s63, %s77
      %p79 = scmp.eq.s32.totalorder %s32, 0
      %p80 = por %p78, %p79
      %s82 = sadd.s32 %s81, 1
      %p85 = scmp.eq.s32.totalorder %s26, 1
      %p86 = scmp.ne.s32.totalorder %s81, %s83
      %p87 = scmp.eq.s32.totalorder %s26, 0
      %p88 = por %p86, %p87
      %p89 = scmp.ne.s32.totalorder %s81, %s83
      %p90 = scmp.eq.s32.totalorder %s31, 1
      %p91 = por %p89, %p90
      %p92 = scmp.ne.s32.totalorder %s83, %s84
      %p93 = scmp.eq.s32.totalorder %s31, 0
      %p94 = por %p92, %p93
      %p95 = scmp.ne.s32.totalorder %s83, %s84
      %p96 = scmp.eq.s32.totalorder %s32, 1
      %p97 = por %p95, %p96
      %p99 = scmp.ne.s32.totalorder %s84, %s98
      %p100 = scmp.eq.s32.totalorder %s32, 0
      %p101 = por %p99, %p100
      %s103 = sadd.s32 %s102, 1
      %p106 = scmp.eq.s32.totalorder %s26, 1
      %p107 = scmp.ne.s32.totalorder %s102, %s104
      %p108 = scmp.eq.s32.totalorder %s26, 0
      %p109 = por %p107, %p108
      %p110 = scmp.ne.s32.totalorder %s102, %s104
      %p111 = scmp.eq.s32.totalorder %s31, 1
      %p112 = por %p110, %p111
      %p113 = scmp.ne.s32.totalorder %s104, %s105
      %p114 = scmp.eq.s32.totalorder %s31, 0
      %p115 = por %p113, %p114
      %p116 = scmp.ne.s32.totalorder %s104, %s105
      %p117 = scmp.eq.s32.totalorder %s32, 1
      %p118 = por %p116, %p117
      %p120 = scmp.ne.s32.totalorder %s105, %s119
      %p121 = scmp.eq.s32.totalorder %s32, 0
      %p122 = por %p120, %p121
      %s124 = sadd.s32 %s123, 1
      %p127 = scmp.eq.s32.totalorder %s26, 1
      %p128 = scmp.ne.s32.totalorder %s123, %s125
      %p129 = scmp.eq.s32.totalorder %s26, 0
      %p130 = por %p128, %p129
      %p131 = scmp.ne.s32.totalorder %s123, %s125
      %p132 = scmp.eq.s32.totalorder %s31, 1
      %p133 = por %p131, %p132
      %p134 = scmp.ne.s32.totalorder %s125, %s126
      %p135 = scmp.eq.s32.totalorder %s31, 0
      %p136 = por %p134, %p135
      %p137 = scmp.ne.s32.totalorder %s125, %s126
      %p138 = scmp.eq.s32.totalorder %s32, 1
      %p139 = por %p137, %p138
      %p141 = scmp.ne.s32.totalorder %s126, %s140
      %p142 = scmp.eq.s32.totalorder %s32, 0
      %p143 = por %p141, %p142
      %s145 = sadd.s32 %s144, 1
      %p148 = scmp.eq.s32.totalorder %s26, 1
      %p149 = scmp.ne.s32.totalorder %s144, %s146
      %p150 = scmp.eq.s32.totalorder %s26, 0
      %p151 = por %p149, %p150
      %p152 = scmp.ne.s32.totalorder %s144, %s146
      %p153 = scmp.eq.s32.totalorder %s31, 1
      %p154 = por %p152, %p153
      %p155 = scmp.ne.s32.totalorder %s146, %s147
      %p156 = scmp.eq.s32.totalorder %s31, 0
      %p157 = por %p155, %p156
      %p158 = scmp.ne.s32.totalorder %s146, %s147
      %p159 = scmp.eq.s32.totalorder %s32, 1
      %p160 = por %p158, %p159
      %p162 = scmp.ne.s32.totalorder %s147, %s161
      %p163 = scmp.eq.s32.totalorder %s32, 0
      %p164 = por %p162, %p163
      %s166 = sadd.s32 %s165, 1
      %p169 = scmp.eq.s32.totalorder %s26, 1
      %p170 = scmp.ne.s32.totalorder %s165, %s167
      %p171 = scmp.eq.s32.totalorder %s26, 0
      %p172 = por %p170, %p171
      %p173 = scmp.ne.s32.totalorder %s165, %s167
      %p174 = scmp.eq.s32.totalorder %s31, 1
      %p175 = por %p173, %p174
      %p176 = scmp.ne.s32.totalorder %s167, %s168
      %p177 = scmp.eq.s32.totalorder %s31, 0
      %p178 = por %p176, %p177
      %p179 = scmp.ne.s32.totalorder %s167, %s168
      %p180 = scmp.eq.s32.totalorder %s32, 1
      %p181 = por %p179, %p180
      %p183 = scmp.ne.s32.totalorder %s168, %s182
      %p184 = scmp.eq.s32.totalorder %s32, 0
      %p185 = por %p183, %p184
      %s187 = sadd.s32 %s186, 1
      %p190 = scmp.eq.s32.totalorder %s26, 1
      %p191 = scmp.ne.s32.totalorder %s186, %s188
      %p192 = scmp.eq.s32.totalorder %s26, 0
      %p193 = por %p191, %p192
      %p194 = scmp.ne.s32.totalorder %s186, %s188
      %p195 = scmp.eq.s32.totalorder %s31, 1
      %p196 = por %p194, %p195
      %p197 = scmp.ne.s32.totalorder %s188, %s189
      %p198 = scmp.eq.s32.totalorder %s31, 0
      %p199 = por %p197, %p198
      %p200 = scmp.ne.s32.totalorder %s188, %s189
      %p201 = scmp.eq.s32.totalorder %s32, 1
      %p202 = por %p200, %p201
      %p204 = scmp.ne.s32.totalorder %s189, %s203
      %p205 = scmp.eq.s32.totalorder %s32, 0
      %p206 = por %p204, %p205
      %s208 = sadd.s32 %s207, 1
      %p211 = scmp.eq.s32.totalorder %s26, 1
      %p212 = scmp.ne.s32.totalorder %s207, %s209
      %p213 = scmp.eq.s32.totalorder %s26, 0
      %p214 = por %p212, %p213
      %p215 = scmp.ne.s32.totalorder %s207, %s209
      %p216 = scmp.eq.s32.totalorder %s31, 1
      %p217 = por %p215, %p216
      %p218 = scmp.ne.s32.totalorder %s209, %s210
      %p219 = scmp.eq.s32.totalorder %s31, 0
      %p220 = por %p218, %p219
      %p221 = scmp.ne.s32.totalorder %s209, %s210
      %p222 = scmp.eq.s32.totalorder %s32, 1
      %p223 = por %p221, %p222
      %p225 = scmp.ne.s32.totalorder %s210, %s224
      %p226 = scmp.eq.s32.totalorder %s32, 0
      %p227 = por %p225, %p226
      %s229 = sadd.s32 %s228, 1
      %p232 = scmp.eq.s32.totalorder %s26, 1
      %p233 = scmp.ne.s32.totalorder %s228, %s230
      %p234 = scmp.eq.s32.totalorder %s26, 0
      %p235 = por %p233, %p234
      %p236 = scmp.ne.s32.totalorder %s228, %s230
      %p237 = scmp.eq.s32.totalorder %s31, 1
      %p238 = por %p236, %p237
      %p239 = scmp.ne.s32.totalorder %s230, %s231
      %p240 = scmp.eq.s32.totalorder %s31, 0
      %p241 = por %p239, %p240
      %p242 = scmp.ne.s32.totalorder %s230, %s231
      %p243 = scmp.eq.s32.totalorder %s32, 1
      %p244 = por %p242, %p243
      %p246 = scmp.ne.s32.totalorder %s231, %s245
      %p247 = scmp.eq.s32.totalorder %s32, 0
      %p248 = por %p246, %p247
      %s250 = sadd.s32 %s249, 1
      %p253 = scmp.eq.s32.totalorder %s26, 1
      %p254 = scmp.ne.s32.totalorder %s249, %s251
      %p255 = scmp.eq.s32.totalorder %s26, 0
      %p256 = por %p254, %p255
      %p257 = scmp.ne.s32.totalorder %s249, %s251
      %p258 = scmp.eq.s32.totalorder %s31, 1
      %p259 = por %p257, %p258
      %p260 = scmp.ne.s32.totalorder %s251, %s252
      %p261 = scmp.eq.s32.totalorder %s31, 0
      %p262 = por %p260, %p261
      %p263 = scmp.ne.s32.totalorder %s251, %s252
      %p264 = scmp.eq.s32.totalorder %s32, 1
      %p265 = por %p263, %p264
      %p267 = scmp.ne.s32.totalorder %s252, %s266
      %p268 = scmp.eq.s32.totalorder %s32, 0
      %p269 = por %p267, %p268
      %s271 = sadd.s32 %s270, 1
      %p274 = scmp.eq.s32.totalorder %s26, 1
      %p275 = scmp.ne.s32.totalorder %s270, %s272
      %p276 = scmp.eq.s32.totalorder %s26, 0
      %p277 = por %p275, %p276
      %p278 = scmp.ne.s32.totalorder %s270, %s272
      %p279 = scmp.eq.s32.totalorder %s31, 1
      %p280 = por %p278, %p279
      %p281 = scmp.ne.s32.totalorder %s272, %s273
      %p282 = scmp.eq.s32.totalorder %s31, 0
      %p283 = por %p281, %p282
      %p284 = scmp.ne.s32.totalorder %s272, %s273
      %p285 = scmp.eq.s32.totalorder %s32, 1
      %p286 = por %p284, %p285
      %p288 = scmp.ne.s32.totalorder %s273, %s287
      %p289 = scmp.eq.s32.totalorder %s32, 0
      %p290 = por %p288, %p289
      %s292 = sadd.s32 %s291, 1
      %p295 = scmp.eq.s32.totalorder %s26, 1
      %p296 = scmp.ne.s32.totalorder %s291, %s293
      %p297 = scmp.eq.s32.totalorder %s26, 0
      %p298 = por %p296, %p297
      %p299 = scmp.ne.s32.totalorder %s291, %s293
      %p300 = scmp.eq.s32.totalorder %s31, 1
      %p301 = por %p299, %p300
      %p302 = scmp.ne.s32.totalorder %s293, %s294
      %p303 = scmp.eq.s32.totalorder %s31, 0
      %p304 = por %p302, %p303
      %p305 = scmp.ne.s32.totalorder %s293, %s294
      %p306 = scmp.eq.s32.totalorder %s32, 1
      %p307 = por %p305, %p306
      %p309 = scmp.ne.s32.totalorder %s294, %s308
      %p310 = scmp.eq.s32.totalorder %s32, 0
      %p311 = por %p309, %p310
      %s313 = sadd.s32 %s312, 1
      %p316 = scmp.eq.s32.totalorder %s26, 1
      %p317 = scmp.ne.s32.totalorder %s312, %s314
      %p318 = scmp.eq.s32.totalorder %s26, 0
      %p319 = por %p317, %p318
      %p320 = scmp.ne.s32.totalorder %s312, %s314
      %p321 = scmp.eq.s32.totalorder %s31, 1
      %p322 = por %p320, %p321
      %p323 = scmp.ne.s32.totalorder %s314, %s315
      %p324 = scmp.eq.s32.totalorder %s31, 0
      %p325 = por %p323, %p324
      %p326 = scmp.ne.s32.totalorder %s314, %s315
      %p327 = scmp.eq.s32.totalorder %s32, 1
      %p328 = por %p326, %p327
      %p330 = scmp.ne.s32.totalorder %s315, %s329
      %p331 = scmp.eq.s32.totalorder %s32, 0
      %p332 = por %p330, %p331
      %s334 = sadd.s32 %s333, 1
      %p337 = scmp.eq.s32.totalorder %s26, 1
      %p338 = scmp.ne.s32.totalorder %s333, %s335
      %p339 = scmp.eq.s32.totalorder %s26, 0
      %p340 = por %p338, %p339
      %p341 = scmp.ne.s32.totalorder %s333, %s335
      %p342 = scmp.eq.s32.totalorder %s31, 1
      %p343 = por %p341, %p342
      %p344 = scmp.ne.s32.totalorder %s335, %s336
      %p345 = scmp.eq.s32.totalorder %s31, 0
      %p346 = por %p344, %p345
      %p347 = scmp.ne.s32.totalorder %s335, %s336
      %p348 = scmp.eq.s32.totalorder %s32, 1
      %p349 = por %p347, %p348
      %p351 = scmp.ne.s32.totalorder %s336, %s350
      %p352 = scmp.eq.s32.totalorder %s32, 0
      %p353 = por %p351, %p352
      %s355 = sadd.s32 %s354, 1
      %p358 = scmp.eq.s32.totalorder %s26, 1
      %p359 = scmp.ne.s32.totalorder %s354, %s356
      %p360 = scmp.eq.s32.totalorder %s26, 0
      %p361 = por %p359, %p360
      %p362 = scmp.ne.s32.totalorder %s354, %s356
      %p363 = scmp.eq.s32.totalorder %s31, 1
      %p364 = por %p362, %p363
      %p365 = scmp.ne.s32.totalorder %s356, %s357
      %p366 = scmp.eq.s32.totalorder %s31, 0
      %p367 = por %p365, %p366
      %p368 = scmp.ne.s32.totalorder %s356, %s357
      %p369 = scmp.eq.s32.totalorder %s32, 1
      %p370 = por %p368, %p369
      %p372 = scmp.ne.s32.totalorder %s357, %s371
      %p373 = scmp.eq.s32.totalorder %s32, 0
      %p374 = por %p372, %p373
      %s376 = sadd.s32 %s375, 1
      %p379 = scmp.eq.s32.totalorder %s26, 1
      %p380 = scmp.ne.s32.totalorder %s375, %s377
      %p381 = scmp.eq.s32.totalorder %s26, 0
      %p382 = por %p380, %p381
      %p383 = scmp.ne.s32.totalorder %s375, %s377
      %p384 = scmp.eq.s32.totalorder %s31, 1
      %p385 = por %p383, %p384
      %p386 = scmp.ne.s32.totalorder %s377, %s378
      %p387 = scmp.eq.s32.totalorder %s31, 0
      %p388 = por %p386, %p387
      %p389 = scmp.ne.s32.totalorder %s377, %s378
      %p390 = scmp.eq.s32.totalorder %s32, 1
      %p391 = por %p389, %p390
      %p393 = scmp.ne.s32.totalorder %s378, %s392
      %p394 = scmp.eq.s32.totalorder %s32, 0
      %p395 = por %p393, %p394
      %s396 = ssub.s32 %s26, %s33
      %p397 = scmp.eq.s32.totalorder %s396, 0
      %s399 = sadd.s32 %s398, 1
      %s400 = scalar_select %p397, %s398, %s399
      %p403 = pneg %p397
      %p404 = scmp.eq.s32.totalorder %s26, 1
      %p405 = por %p403, %p404
      %p406 = scmp.ne.s32.totalorder %s398, %s401
      %p407 = scmp.eq.s32.totalorder %s26, 0
      %p408 = por %p406, %p407
      %p409 = scmp.ne.s32.totalorder %s398, %s401
      %p410 = scmp.eq.s32.totalorder %s31, 1
      %p411 = por %p409, %p410
      %p412 = scmp.ne.s32.totalorder %s401, %s402
      %p413 = scmp.eq.s32.totalorder %s31, 0
      %p414 = por %p412, %p413
      %p415 = scmp.ne.s32.totalorder %s401, %s402
      %p416 = scmp.eq.s32.totalorder %s32, 1
      %p417 = por %p415, %p416
      %p419 = scmp.ne.s32.totalorder %s402, %s418
      %p420 = scmp.eq.s32.totalorder %s32, 0
      %p421 = por %p419, %p420
      %p422 = scmp.le.s32.totalorder 1, %s26
      %p423 = scmp.lt.s32.totalorder %s26, 3
      %p424 = pnand %p422, %p423
      %p425 = pneg %p424
      // Predicated region
      $region9: #{tpu_custom_call.1} parent=5 // pred_check
        _
      $region10: #{tpu_custom_call.1} parent=5 // pred_check_branch
        %427 = sbr.rel (%p424) target = $region12
      $region11: #{tpu_custom_call.1} parent=5 // pred_region
        %s428 = ssub.s32 %s26, 1
        // Predicated region
        $region13: #{tpu_custom_call.1} parent=11 // pred_check
          %p429 = pneg %p73
        $region14: #{tpu_custom_call.1} parent=11 // pred_check_branch
          %431 = sbr.rel (%p429) target = $region16
        $region15: #{tpu_custom_call.1} parent=11 // pred_region
          _
        $region16: #{tpu_custom_call.1} parent=11 // pred_fallthru
          _
        // Predicated region
        $region17: #{tpu_custom_call.1} parent=11 // pred_check
          %p432 = pneg %p94
        $region18: #{tpu_custom_call.1} parent=11 // pred_check_branch
          %434 = sbr.rel (%p432) target = $region20
        $region19: #{tpu_custom_call.1} parent=11 // pred_region
          _
        $region20: #{tpu_custom_call.1} parent=11 // pred_fallthru
          _
        // Predicated region
        $region21: #{tpu_custom_call.1} parent=11 // pred_check
          %p435 = pneg %p115
        $region22: #{tpu_custom_call.1} parent=11 // pred_check_branch
          %437 = sbr.rel (%p435) target = $region24
        $region23: #{tpu_custom_call.1} parent=11 // pred_region
          _
        $region24: #{tpu_custom_call.1} parent=11 // pred_fallthru
          _
        // Predicated region
        $region25: #{tpu_custom_call.1} parent=11 // pred_check
          %p438 = pneg %p136
        $region26: #{tpu_custom_call.1} parent=11 // pred_check_branch
          %440 = sbr.rel (%p438) target = $region28
        $region27: #{tpu_custom_call.1} parent=11 // pred_region
          _
        $region28: #{tpu_custom_call.1} parent=11 // pred_fallthru
          _
        // Predicated region
        $region29: #{tpu_custom_call.1} parent=11 // pred_check
          %p441 = pneg %p157
        $region30: #{tpu_custom_call.1} parent=11 // pred_check_branch
          %443 = sbr.rel (%p441) target = $region32
        $region31: #{tpu_custom_call.1} parent=11 // pred_region
          _
        $region32: #{tpu_custom_call.1} parent=11 // pred_fallthru
          _
        // Predicated region
        $region33: #{tpu_custom_call.1} parent=11 // pred_check
          %p444 = pneg %p178
        $region34: #{tpu_custom_call.1} parent=11 // pred_check_branch
          %446 = sbr.rel (%p444) target = $region36
        $region35: #{tpu_custom_call.1} parent=11 // pred_region
          _
        $region36: #{tpu_custom_call.1} parent=11 // pred_fallthru
          _
        // Predicated region
        $region37: #{tpu_custom_call.1} parent=11 // pred_check
          %p447 = pneg %p199
        $region38: #{tpu_custom_call.1} parent=11 // pred_check_branch
          %449 = sbr.rel (%p447) target = $region40
        $region39: #{tpu_custom_call.1} parent=11 // pred_region
          _
        $region40: #{tpu_custom_call.1} parent=11 // pred_fallthru
          _
        // Predicated region
        $region41: #{tpu_custom_call.1} parent=11 // pred_check
          %p450 = pneg %p220
        $region42: #{tpu_custom_call.1} parent=11 // pred_check_branch
          %452 = sbr.rel (%p450) target = $region44
        $region43: #{tpu_custom_call.1} parent=11 // pred_region
          _
        $region44: #{tpu_custom_call.1} parent=11 // pred_fallthru
          _
        // Predicated region
        $region45: #{tpu_custom_call.1} parent=11 // pred_check
          %p453 = pneg %p241
        $region46: #{tpu_custom_call.1} parent=11 // pred_check_branch
          %455 = sbr.rel (%p453) target = $region48
        $region47: #{tpu_custom_call.1} parent=11 // pred_region
          _
        $region48: #{tpu_custom_call.1} parent=11 // pred_fallthru
          _
        // Predicated region
        $region49: #{tpu_custom_call.1} parent=11 // pred_check
          %p456 = pneg %p262
        $region50: #{tpu_custom_call.1} parent=11 // pred_check_branch
          %458 = sbr.rel (%p456) target = $region52
        $region51: #{tpu_custom_call.1} parent=11 // pred_region
          _
        $region52: #{tpu_custom_call.1} parent=11 // pred_fallthru
          _
        // Predicated region
        $region53: #{tpu_custom_call.1} parent=11 // pred_check
          %p459 = pneg %p283
        $region54: #{tpu_custom_call.1} parent=11 // pred_check_branch
          %461 = sbr.rel (%p459) target = $region56
        $region55: #{tpu_custom_call.1} parent=11 // pred_region
          _
        $region56: #{tpu_custom_call.1} parent=11 // pred_fallthru
          _
        // Predicated region
        $region57: #{tpu_custom_call.1} parent=11 // pred_check
          %p462 = pneg %p304
        $region58: #{tpu_custom_call.1} parent=11 // pred_check_branch
          %464 = sbr.rel (%p462) target = $region60
        $region59: #{tpu_custom_call.1} parent=11 // pred_region
          _
        $region60: #{tpu_custom_call.1} parent=11 // pred_fallthru
          _
        // Predicated region
        $region61: #{tpu_custom_call.1} parent=11 // pred_check
          %p465 = pneg %p325
        $region62: #{tpu_custom_call.1} parent=11 // pred_check_branch
          %467 = sbr.rel (%p465) target = $region64
        $region63: #{tpu_custom_call.1} parent=11 // pred_region
          _
        $region64: #{tpu_custom_call.1} parent=11 // pred_fallthru
          _
        // Predicated region
        $region65: #{tpu_custom_call.1} parent=11 // pred_check
          %p468 = pneg %p346
        $region66: #{tpu_custom_call.1} parent=11 // pred_check_branch
          %470 = sbr.rel (%p468) target = $region68
        $region67: #{tpu_custom_call.1} parent=11 // pred_region
          _
        $region68: #{tpu_custom_call.1} parent=11 // pred_fallthru
          _
        // Predicated region
        $region69: #{tpu_custom_call.1} parent=11 // pred_check
          %p471 = pneg %p367
        $region70: #{tpu_custom_call.1} parent=11 // pred_check_branch
          %473 = sbr.rel (%p471) target = $region72
        $region71: #{tpu_custom_call.1} parent=11 // pred_region
          _
        $region72: #{tpu_custom_call.1} parent=11 // pred_fallthru
          _
        // Predicated region
        $region73: #{tpu_custom_call.1} parent=11 // pred_check
          %p474 = pneg %p388
        $region74: #{tpu_custom_call.1} parent=11 // pred_check_branch
          %476 = sbr.rel (%p474) target = $region76
        $region75: #{tpu_custom_call.1} parent=11 // pred_region
          _
        $region76: #{tpu_custom_call.1} parent=11 // pred_fallthru
          _
      $region12: #{tpu_custom_call.1} parent=5 // pred_fallthru
        _
      %p477 = scmp.lt.s32.totalorder %s26, 2
      // Predicated region
      $region77: #{tpu_custom_call.1} parent=5 // pred_check
        %p478 = pneg %p477
      $region78: #{tpu_custom_call.1} parent=5 // pred_check_branch
        %480 = sbr.rel (%p478) target = $region80
      $region79: #{tpu_custom_call.1} parent=5 // pred_region
        // Predicated region
        $region81: #{tpu_custom_call.1} parent=79 // pred_check
          %p481 = pneg %p46
        $region82: #{tpu_custom_call.1} parent=79 // pred_check_branch
          %483 = sbr.rel (%p481) target = $region84
        $region83: #{tpu_custom_call.1} parent=79 // pred_region
          %s484 = smul.u32 4, %s26
          %p485 = scmp.lt.s32.totalorder %s484, 7
          %s486 = scalar_select %p485, %s484, 7
          %s487 = smul.addr %s486, 4
          %s488 = scalar_lea.vmem %s0, %s487
          %s489 = smul.u32 4, %s26
        $region84: #{tpu_custom_call.1} parent=79 // pred_fallthru
          _
      $region80: #{tpu_custom_call.1} parent=5 // pred_fallthru
        _
      %p490 = scmp.le.s32.totalorder 1, %s26
      %p491 = scmp.lt.s32.totalorder %s26, 3
      %p492 = pnand %p490, %p491
      %p493 = pneg %p492
      // Predicated region
      $region85: #{tpu_custom_call.1} parent=5 // pred_check
        _
      $region86: #{tpu_custom_call.1} parent=5 // pred_check_branch
        %495 = sbr.rel (%p492) target = $region88
      $region87: #{tpu_custom_call.1} parent=5 // pred_region
        %s496 = ssub.s32 %s26, 1
        %s497 = smul.u32 4, %s31
        %p498 = scmp.lt.s32.totalorder %s497, 7
        %s499 = scalar_select %p498, %s497, 7
        %s500 = smul.addr %s499, 4
        %s501 = scalar_lea.vmem %s0, %s500
        %p502 = pneg %p52
        %p503 = pneg %p49
        %p504 = pneg %p73
        %p505 = pneg %p70
        %p506 = pneg %p94
        %p507 = pneg %p91
        %p508 = pneg %p115
        %p509 = pneg %p112
        %p510 = pneg %p136
        %p511 = pneg %p133
        %p512 = pneg %p157
        %p513 = pneg %p154
        %p514 = pneg %p178
        %p515 = pneg %p175
        %p516 = pneg %p199
        %p517 = pneg %p196
        %p518 = pneg %p220
        %p519 = pneg %p217
        %p520 = pneg %p241
        %p521 = pneg %p238
        %p522 = pneg %p262
        %p523 = pneg %p259
        %p524 = pneg %p283
        %p525 = pneg %p280
        %p526 = pneg %p304
        %p527 = pneg %p301
        %p528 = pneg %p325
        %p529 = pneg %p322
        %p530 = pneg %p346
        %p531 = pneg %p343
        %p532 = pneg %p367
        %p533 = pneg %p364
        %p534 = pneg %p388
        %p535 = pneg %p385
        %p536 = pneg %p414
        %p537 = pneg %p411
        %s538 = sand.u32 %s401, 1
        %s539 = scalar_lea.sflag [#allocation3], %s538
        %s540 = sand.u32 %s401, 1
        %s541 = smul.addr %s540, 16
        %s542 = scalar_lea.vmem [#allocation2], %s541
        %s543 = smul.u32 4, %s31
        %p544 = scmp.lt.s32.totalorder %s543, 7
        %s545 = scalar_select %p544, %s543, 7
        %s546 = smul.addr %s545, 4
        %s547 = scalar_lea.vmem %s0, %s546
        %s548 = smul.u32 4, %s31
        %s549 = smul.u32 4, %s31
        %v551 = vld [vmem:[%s547] sm:$0x77]
        %v552 = vld [vmem:[%s547 + $0x8] sm:$0x77]
        %v553 = vld [vmem:[%s1] sm:$0xf]
        %v554 = vld [vmem:[%s1 + $0x4] sm:$0xf]
        %v555 = vld [vmem:[%s1 + $0x8] sm:$0xf]
        %v556 = vld [vmem:[%s1 + $0xc] sm:$0xf]
        %v557 = vld [vmem:[%s1 + $0x10] sm:$0xf]
        %v558 = vld [vmem:[%s1 + $0x14] sm:$0xf]
        %v559 = vld [vmem:[%s1 + $0x18] sm:$0xf]
        %v560 = vld [vmem:[%s1 + $0x1c] sm:$0xf]
        %v561 = vld [vmem:[%s1 + $0x20] sm:$0xf]
        %v562 = vld [vmem:[%s1 + $0x24] sm:$0xf]
        %v563 = vld [vmem:[%s1 + $0x28] sm:$0xf]
        %v564 = vld [vmem:[%s1 + $0x2c] sm:$0xf]
        %v565 = vld [vmem:[%s1 + $0x30] sm:$0xf]
        %v566 = vld [vmem:[%s1 + $0x34] sm:$0xf]
        %v567 = vld [vmem:[%s1 + $0x38] sm:$0xf]
        %v568 = vld [vmem:[%s1 + $0x3c] sm:$0xf]
        %v569 = vld [vmem:[%s2] sm:$0xff]
        %v570 = vld [vmem:[%s2 + $0x8] sm:$0xff]
        %v571 = vld [vmem:[%s2 + $0x10] sm:$0xff]
        %v572 = vld [vmem:[%s2 + $0x18] sm:$0xff]
        %v573 = vld [vmem:[%s2 + $0x20] sm:$0xff]
        %v574 = vld [vmem:[%s2 + $0x28] sm:$0xff]
        %v575 = vld [vmem:[%s2 + $0x30] sm:$0xff]
        %v576 = vld [vmem:[%s2 + $0x38] sm:$0xff]
        %v577 = vld [vmem:[%s2 + $0x40] sm:$0xff]
        %v578 = vld [vmem:[%s2 + $0x48] sm:$0xff]
        %v579 = vld [vmem:[%s2 + $0x50] sm:$0xff]
        %v580 = vld [vmem:[%s2 + $0x58] sm:$0xff]
        %v581 = vld [vmem:[%s2 + $0x60] sm:$0xff]
        %v582 = vld [vmem:[%s2 + $0x68] sm:$0xff]
        %v583 = vld [vmem:[%s2 + $0x70] sm:$0xff]
        %v584 = vld [vmem:[%s2 + $0x78] sm:$0xff]
        %v587 = vcombine.high %v551, %v551
        %v588 = vcombine.high %v552, %v552
        %v591 = vpack.c.bf16 %v551, %v551
        %v592 = vpack.c.bf16 %v587, %v587
        %v593 = vpack.c.bf16 %v552, %v552
        %v594 = vpack.c.bf16 %v588, %v588
        %596 = vset.pattern.permute.xlu0 0
        %597 = vperm.xlu0 %596, %v569
        %v598 = vpop.permute.xlu0 %597
        %601 = vset.pattern.permute.xlu0 0
        %602 = vperm.xlu0 %601, %v570
        %v603 = vpop.permute.xlu0 %602
        %606 = vset.pattern.permute.xlu0 0
        %607 = vperm.xlu0 %606, %v571
        %v608 = vpop.permute.xlu0 %607
        %611 = vset.pattern.permute.xlu0 0
        %612 = vperm.xlu0 %611, %v572
        %v613 = vpop.permute.xlu0 %612
        %616 = vset.pattern.permute.xlu0 0
        %617 = vperm.xlu0 %616, %v573
        %v618 = vpop.permute.xlu0 %617
        %621 = vset.pattern.permute.xlu0 0
        %622 = vperm.xlu0 %621, %v574
        %v623 = vpop.permute.xlu0 %622
        %626 = vset.pattern.permute.xlu0 0
        %627 = vperm.xlu0 %626, %v575
        %v628 = vpop.permute.xlu0 %627
        %631 = vset.pattern.permute.xlu0 0
        %632 = vperm.xlu0 %631, %v576
        %v633 = vpop.permute.xlu0 %632
        %636 = vset.pattern.permute.xlu0 0
        %637 = vperm.xlu0 %636, %v577
        %v638 = vpop.permute.xlu0 %637
        %641 = vset.pattern.permute.xlu0 0
        %642 = vperm.xlu0 %641, %v578
        %v643 = vpop.permute.xlu0 %642
        %646 = vset.pattern.permute.xlu0 0
        %647 = vperm.xlu0 %646, %v579
        %v648 = vpop.permute.xlu0 %647
        %651 = vset.pattern.permute.xlu0 0
        %652 = vperm.xlu0 %651, %v580
        %v653 = vpop.permute.xlu0 %652
        %656 = vset.pattern.permute.xlu0 0
        %657 = vperm.xlu0 %656, %v581
        %v658 = vpop.permute.xlu0 %657
        %661 = vset.pattern.permute.xlu0 0
        %662 = vperm.xlu0 %661, %v582
        %v663 = vpop.permute.xlu0 %662
        %666 = vset.pattern.permute.xlu0 0
        %667 = vperm.xlu0 %666, %v583
        %v668 = vpop.permute.xlu0 %667
        %671 = vset.pattern.permute.xlu0 0
        %672 = vperm.xlu0 %671, %v584
        %v673 = vpop.permute.xlu0 %672
        %v691 = vunpack.c.l.b16 %v553
        %v692 = vunpack.c.l.b16 %v554
        %v693 = vunpack.c.l.b16 %v555
        %v694 = vunpack.c.l.b16 %v556
        %v695 = vunpack.c.l.b16 %v557
        %v696 = vunpack.c.l.b16 %v558
        %v697 = vunpack.c.l.b16 %v559
        %v698 = vunpack.c.l.b16 %v560
        %v699 = vunpack.c.l.b16 %v561
        %v700 = vunpack.c.l.b16 %v562
        %v701 = vunpack.c.l.b16 %v563
        %v702 = vunpack.c.l.b16 %v564
        %v703 = vunpack.c.l.b16 %v565
        %v704 = vunpack.c.l.b16 %v566
        %v705 = vunpack.c.l.b16 %v567
        %v706 = vunpack.c.l.b16 %v568
        %v707 = vpack.c.b16 %v692, %v691
        %v708 = vpack.c.b16 %v694, %v693
        %v709 = vpack.c.b16 %v696, %v695
        %v710 = vpack.c.b16 %v698, %v697
        %v711 = vpack.c.b16 %v700, %v699
        %v712 = vpack.c.b16 %v702, %v701
        %v713 = vpack.c.b16 %v704, %v703
        %v714 = vpack.c.b16 %v706, %v705
        %vm715 = vcmask 23552
        %v717 = vsel %vm715, %v707, 0
        %v720 = vsel %vm715, %v708, 0
        %v723 = vsel %vm715, %v709, 0
        %v726 = vsel %vm715, %v710, 0
        %v729 = vsel %vm715, %v711, 0
        %v732 = vsel %vm715, %v712, 0
        %v735 = vsel %vm715, %v713, 0
        %v738 = vsel %vm715, %v714, 0
        %vm740 = vcmask 1040384
        %vm741 = vcmask 1041408
        %v742 = vsel %vm740, 4294967295, 65535
        %v743 = vsel %vm741, %v742, 0
        %v745 = vand.u32 %v591, %v743
        %v748 = vand.u32 %v592, %v743
        %v751 = vand.u32 %v593, %v743
        %v754 = vand.u32 %v594, %v743
        %756 = vmatprep.subr.bf16.mxu0 0
        %757 = vmatpush1.bf16.msra.mxu0 0
        %758 = vmatprep.subr.bf16.mxu0 0
        %759 = vmatpush1.bf16.msra.mxu0 0
        %760 = vmatprep.subr.bf16.mxu0 0
        %761 = vmatpush1.bf16.msra.mxu0 0
        %762 = vmatprep.subr.bf16.mxu0 0
        %763 = vmatpush1.bf16.msra.mxu0 0
        %764 = vmatprep.subr.bf16.mxu0 0
        %765 = vmatpush1.bf16.msra.mxu0 0
        %766 = vmatprep.subr.bf16.mxu0 0
        %767 = vmatpush1.bf16.msra.mxu0 0
        %768 = vmatprep.subr.bf16.mxu0 0
        %769 = vmatpush1.bf16.msra.mxu0 0
        %770 = vmatprep.subr.bf16.mxu0 %v748
        %771 = vmatpush1.bf16.msra.mxu0 %v745
        %772 = vmatprep.subr.bf16.mxu0 0
        %773 = vmatpush2.bf16.msra.mxu0 0
        %774 = vmatprep.subr.bf16.mxu0 0
        %775 = vmatpush2.bf16.msra.mxu0 0
        %776 = vmatprep.subr.bf16.mxu0 0
        %777 = vmatpush2.bf16.msra.mxu0 0
        %778 = vmatprep.subr.bf16.mxu0 0
        %779 = vmatpush2.bf16.msra.mxu0 0
        %780 = vmatprep.subr.bf16.mxu0 0
        %781 = vmatpush2.bf16.msra.mxu0 0
        %782 = vmatprep.subr.bf16.mxu0 0
        %783 = vmatpush2.bf16.msra.mxu0 0
        %784 = vmatprep.subr.bf16.mxu0 0
        %785 = vmatpush2.bf16.msra.mxu0 0
        %786 = vmatprep.subr.bf16.mxu0 0
        %787 = vmatpush2.bf16.msra.mxu0 0
        %788 = vmatprep.mubr.bf16.mxu0 0
        %789 = vmatmul.mubr.bf16.gmra.mxu0 %v717
        %v790 = vpop.f32.mrf.mxu0
        %v791 = vadd.f32 %v598, %v790
        %v792 = vpop.f32.mrf.mxu0
        %v793 = vadd.f32 %v598, %v792
        %v794 = vpop.f32.mrf.mxu0
        %v795 = vadd.f32 %v603, %v794
        %v796 = vpop.f32.mrf.mxu0
        %v797 = vadd.f32 %v603, %v796
        %798 = vmatprep.mubr.bf16.mxu0 0
        %799 = vmatmul.mubr.bf16.gmra.mxu0 %v720
        %v800 = vpop.f32.mrf.mxu0
        %v801 = vadd.f32 %v608, %v800
        %v802 = vpop.f32.mrf.mxu0
        %v803 = vadd.f32 %v608, %v802
        %v804 = vpop.f32.mrf.mxu0
        %v805 = vadd.f32 %v613, %v804
        %v806 = vpop.f32.mrf.mxu0
        %v807 = vadd.f32 %v613, %v806
        %808 = vmatprep.mubr.bf16.mxu0 0
        %809 = vmatmul.mubr.bf16.gmra.mxu0 %v723
        %v810 = vpop.f32.mrf.mxu0
        %v811 = vadd.f32 %v618, %v810
        %v812 = vpop.f32.mrf.mxu0
        %v813 = vadd.f32 %v618, %v812
        %v814 = vpop.f32.mrf.mxu0
        %v815 = vadd.f32 %v623, %v814
        %v816 = vpop.f32.mrf.mxu0
        %v817 = vadd.f32 %v623, %v816
        %818 = vmatprep.mubr.bf16.mxu0 0
        %819 = vmatmul.mubr.bf16.gmra.mxu0 %v726
        %v820 = vpop.f32.mrf.mxu0
        %v821 = vadd.f32 %v628, %v820
        %v822 = vpop.f32.mrf.mxu0
        %v823 = vadd.f32 %v628, %v822
        %v824 = vpop.f32.mrf.mxu0
        %v825 = vadd.f32 %v633, %v824
        %v826 = vpop.f32.mrf.mxu0
        %v827 = vadd.f32 %v633, %v826
        %828 = vmatprep.mubr.bf16.mxu0 0
        %829 = vmatmul.mubr.bf16.gmra.mxu0 %v729
        %v830 = vpop.f32.mrf.mxu0
        %v831 = vadd.f32 %v638, %v830
        %v832 = vpop.f32.mrf.mxu0
        %v833 = vadd.f32 %v638, %v832
        %v834 = vpop.f32.mrf.mxu0
        %v835 = vadd.f32 %v643, %v834
        %v836 = vpop.f32.mrf.mxu0
        %v837 = vadd.f32 %v643, %v836
        %838 = vmatprep.mubr.bf16.mxu0 0
        %839 = vmatmul.mubr.bf16.gmra.mxu0 %v732
        %v840 = vpop.f32.mrf.mxu0
        %v841 = vadd.f32 %v648, %v840
        %v842 = vpop.f32.mrf.mxu0
        %v843 = vadd.f32 %v648, %v842
        %v844 = vpop.f32.mrf.mxu0
        %v845 = vadd.f32 %v653, %v844
        %v846 = vpop.f32.mrf.mxu0
        %v847 = vadd.f32 %v653, %v846
        %848 = vmatprep.mubr.bf16.mxu0 0
        %849 = vmatmul.mubr.bf16.gmra.mxu0 %v735
        %v850 = vpop.f32.mrf.mxu0
        %v851 = vadd.f32 %v658, %v850
        %v852 = vpop.f32.mrf.mxu0
        %v853 = vadd.f32 %v658, %v852
        %v854 = vpop.f32.mrf.mxu0
        %v855 = vadd.f32 %v663, %v854
        %v856 = vpop.f32.mrf.mxu0
        %v857 = vadd.f32 %v663, %v856
        %858 = vmatprep.mubr.bf16.mxu0 0
        %859 = vmatmul.mubr.bf16.gmra.mxu0 %v738
        %v860 = vpop.f32.mrf.mxu0
        %v861 = vadd.f32 %v668, %v860
        %v862 = vpop.f32.mrf.mxu0
        %v863 = vadd.f32 %v668, %v862
        %v864 = vpop.f32.mrf.mxu0
        %v865 = vadd.f32 %v673, %v864
        %v866 = vpop.f32.mrf.mxu0
        %v867 = vadd.f32 %v673, %v866
        %868 = vdwg.mxu0
        %869 = vmatprep.subr.bf16.mxu0 0
        %870 = vmatpush1.bf16.msra.mxu0 0
        %871 = vmatprep.subr.bf16.mxu0 0
        %872 = vmatpush1.bf16.msra.mxu0 0
        %873 = vmatprep.subr.bf16.mxu0 0
        %874 = vmatpush1.bf16.msra.mxu0 0
        %875 = vmatprep.subr.bf16.mxu0 0
        %876 = vmatpush1.bf16.msra.mxu0 0
        %877 = vmatprep.subr.bf16.mxu0 0
        %878 = vmatpush1.bf16.msra.mxu0 0
        %879 = vmatprep.subr.bf16.mxu0 0
        %880 = vmatpush1.bf16.msra.mxu0 0
        %881 = vmatprep.subr.bf16.mxu0 0
        %882 = vmatpush1.bf16.msra.mxu0 0
        %883 = vmatprep.subr.bf16.mxu0 %v754
        %884 = vmatpush1.bf16.msra.mxu0 %v751
        %885 = vmatprep.subr.bf16.mxu0 0
        %886 = vmatpush2.bf16.msra.mxu0 0
        %887 = vmatprep.subr.bf16.mxu0 0
        %888 = vmatpush2.bf16.msra.mxu0 0
        %889 = vmatprep.subr.bf16.mxu0 0
        %890 = vmatpush2.bf16.msra.mxu0 0
        %891 = vmatprep.subr.bf16.mxu0 0
        %892 = vmatpush2.bf16.msra.mxu0 0
        %893 = vmatprep.subr.bf16.mxu0 0
        %894 = vmatpush2.bf16.msra.mxu0 0
        %895 = vmatprep.subr.bf16.mxu0 0
        %896 = vmatpush2.bf16.msra.mxu0 0
        %897 = vmatprep.subr.bf16.mxu0 0
        %898 = vmatpush2.bf16.msra.mxu0 0
        %899 = vmatprep.subr.bf16.mxu0 0
        %900 = vmatpush2.bf16.msra.mxu0 0
        %901 = vmatprep.mubr.bf16.mxu0 0
        %902 = vmatmul.mubr.bf16.gmra.mxu0 %v717
        %v903 = vpop.f32.mrf.mxu0
        %v904 = vadd.f32 %v598, %v903
        %v905 = vpop.f32.mrf.mxu0
        %v906 = vadd.f32 %v598, %v905
        %v907 = vpop.f32.mrf.mxu0
        %v908 = vadd.f32 %v603, %v907
        %v909 = vpop.f32.mrf.mxu0
        %v910 = vadd.f32 %v603, %v909
        %911 = vmatprep.mubr.bf16.mxu0 0
        %912 = vmatmul.mubr.bf16.gmra.mxu0 %v720
        %v913 = vpop.f32.mrf.mxu0
        %v914 = vadd.f32 %v608, %v913
        %v915 = vpop.f32.mrf.mxu0
        %v916 = vadd.f32 %v608, %v915
        %v917 = vpop.f32.mrf.mxu0
        %v918 = vadd.f32 %v613, %v917
        %v919 = vpop.f32.mrf.mxu0
        %v920 = vadd.f32 %v613, %v919
        %921 = vmatprep.mubr.bf16.mxu0 0
        %922 = vmatmul.mubr.bf16.gmra.mxu0 %v723
        %v923 = vpop.f32.mrf.mxu0
        %v924 = vadd.f32 %v618, %v923
        %v925 = vpop.f32.mrf.mxu0
        %v926 = vadd.f32 %v618, %v925
        %v927 = vpop.f32.mrf.mxu0
        %v928 = vadd.f32 %v623, %v927
        %v929 = vpop.f32.mrf.mxu0
        %v930 = vadd.f32 %v623, %v929
        %931 = vmatprep.mubr.bf16.mxu0 0
        %932 = vmatmul.mubr.bf16.gmra.mxu0 %v726
        %v933 = vpop.f32.mrf.mxu0
        %v934 = vadd.f32 %v628, %v933
        %v935 = vpop.f32.mrf.mxu0
        %v936 = vadd.f32 %v628, %v935
        %v937 = vpop.f32.mrf.mxu0
        %v938 = vadd.f32 %v633, %v937
        %v939 = vpop.f32.mrf.mxu0
        %v940 = vadd.f32 %v633, %v939
        %941 = vmatprep.mubr.bf16.mxu0 0
        %942 = vmatmul.mubr.bf16.gmra.mxu0 %v729
        %v943 = vpop.f32.mrf.mxu0
        %v944 = vadd.f32 %v638, %v943
        %v945 = vpop.f32.mrf.mxu0
        %v946 = vadd.f32 %v638, %v945
        %v947 = vpop.f32.mrf.mxu0
        %v948 = vadd.f32 %v643, %v947
        %v949 = vpop.f32.mrf.mxu0
        %v950 = vadd.f32 %v643, %v949
        %951 = vmatprep.mubr.bf16.mxu0 0
        %952 = vmatmul.mubr.bf16.gmra.mxu0 %v732
        %v953 = vpop.f32.mrf.mxu0
        %v954 = vadd.f32 %v648, %v953
        %v955 = vpop.f32.mrf.mxu0
        %v956 = vadd.f32 %v648, %v955
        %v957 = vpop.f32.mrf.mxu0
        %v958 = vadd.f32 %v653, %v957
        %v959 = vpop.f32.mrf.mxu0
        %v960 = vadd.f32 %v653, %v959
        %961 = vmatprep.mubr.bf16.mxu0 0
        %962 = vmatmul.mubr.bf16.gmra.mxu0 %v735
        %v963 = vpop.f32.mrf.mxu0
        %v964 = vadd.f32 %v658, %v963
        %v965 = vpop.f32.mrf.mxu0
        %v966 = vadd.f32 %v658, %v965
        %v967 = vpop.f32.mrf.mxu0
        %v968 = vadd.f32 %v663, %v967
        %v969 = vpop.f32.mrf.mxu0
        %v970 = vadd.f32 %v663, %v969
        %971 = vmatprep.mubr.bf16.mxu0 0
        %972 = vmatmul.mubr.bf16.gmra.mxu0 %v738
        %v973 = vpop.f32.mrf.mxu0
        %v974 = vadd.f32 %v668, %v973
        %v975 = vpop.f32.mrf.mxu0
        %v976 = vadd.f32 %v668, %v975
        %v977 = vpop.f32.mrf.mxu0
        %v978 = vadd.f32 %v673, %v977
        %v979 = vpop.f32.mrf.mxu0
        %v980 = vadd.f32 %v673, %v979
        %981 = vdwg.mxu0
        %v982 = vmax.f32 %v791, 0.0
        %v983 = vmax.f32 %v793, 0.0
        %v984 = vmax.f32 %v904, 0.0
        %v985 = vmax.f32 %v906, 0.0
        %v986 = vmax.f32 %v795, 0.0
        %v987 = vmax.f32 %v797, 0.0
        %v988 = vmax.f32 %v908, 0.0
        %v989 = vmax.f32 %v910, 0.0
        %v990 = vmax.f32 %v801, 0.0
        %v991 = vmax.f32 %v803, 0.0
        %v992 = vmax.f32 %v914, 0.0
        %v993 = vmax.f32 %v916, 0.0
        %v994 = vmax.f32 %v805, 0.0
        %v995 = vmax.f32 %v807, 0.0
        %v996 = vmax.f32 %v918, 0.0
        %v997 = vmax.f32 %v920, 0.0
        %v998 = vmax.f32 %v811, 0.0
        %v999 = vmax.f32 %v813, 0.0
        %v1000 = vmax.f32 %v924, 0.0
        %v1001 = vmax.f32 %v926, 0.0
        %v1002 = vmax.f32 %v815, 0.0
        %v1003 = vmax.f32 %v817, 0.0
        %v1004 = vmax.f32 %v928, 0.0
        %v1005 = vmax.f32 %v930, 0.0
        %v1006 = vmax.f32 %v821, 0.0
        %v1007 = vmax.f32 %v823, 0.0
        %v1008 = vmax.f32 %v934, 0.0
        %v1009 = vmax.f32 %v936, 0.0
        %v1010 = vmax.f32 %v825, 0.0
        %v1011 = vmax.f32 %v827, 0.0
        %v1012 = vmax.f32 %v938, 0.0
        %v1013 = vmax.f32 %v940, 0.0
        %v1014 = vmax.f32 %v831, 0.0
        %v1015 = vmax.f32 %v833, 0.0
        %v1016 = vmax.f32 %v944, 0.0
        %v1017 = vmax.f32 %v946, 0.0
        %v1018 = vmax.f32 %v835, 0.0
        %v1019 = vmax.f32 %v837, 0.0
        %v1020 = vmax.f32 %v948, 0.0
        %v1021 = vmax.f32 %v950, 0.0
        %v1022 = vmax.f32 %v841, 0.0
        %v1023 = vmax.f32 %v843, 0.0
        %v1024 = vmax.f32 %v954, 0.0
        %v1025 = vmax.f32 %v956, 0.0
        %v1026 = vmax.f32 %v845, 0.0
        %v1027 = vmax.f32 %v847, 0.0
        %v1028 = vmax.f32 %v958, 0.0
        %v1029 = vmax.f32 %v960, 0.0
        %v1030 = vmax.f32 %v851, 0.0
        %v1031 = vmax.f32 %v853, 0.0
        %v1032 = vmax.f32 %v964, 0.0
        %v1033 = vmax.f32 %v966, 0.0
        %v1034 = vmax.f32 %v855, 0.0
        %v1035 = vmax.f32 %v857, 0.0
        %v1036 = vmax.f32 %v968, 0.0
        %v1037 = vmax.f32 %v970, 0.0
        %v1038 = vmax.f32 %v861, 0.0
        %v1039 = vmax.f32 %v863, 0.0
        %v1040 = vmax.f32 %v974, 0.0
        %v1041 = vmax.f32 %v976, 0.0
        %v1042 = vmax.f32 %v865, 0.0
        %v1043 = vmax.f32 %v867, 0.0
        %v1044 = vmax.f32 %v978, 0.0
        %v1045 = vmax.f32 %v980, 0.0
        %v1046 = vld [vmem:[%s3] sm:$0xf]
        %v1047 = vld [vmem:[%s3 + $0x4] sm:$0xf]
        %v1048 = vld [vmem:[%s3 + $0x8] sm:$0xf]
        %v1049 = vld [vmem:[%s3 + $0xc] sm:$0xf]
        %v1050 = vld [vmem:[%s3 + $0x10] sm:$0xf]
        %v1051 = vld [vmem:[%s3 + $0x14] sm:$0xf]
        %v1052 = vld [vmem:[%s3 + $0x18] sm:$0xf]
        %v1053 = vld [vmem:[%s3 + $0x1c] sm:$0xf]
        %v1054 = vld [vmem:[%s4] sm:$0xff]
        %v1055 = vld [vmem:[%s4 + $0x8] sm:$0xff]
        %v1056 = vld [vmem:[%s4 + $0x10] sm:$0xff]
        %v1057 = vld [vmem:[%s4 + $0x18] sm:$0xff]
        %v1058 = vld [vmem:[%s4 + $0x20] sm:$0xff]
        %v1059 = vld [vmem:[%s4 + $0x28] sm:$0xff]
        %v1060 = vld [vmem:[%s4 + $0x30] sm:$0xff]
        %v1061 = vld [vmem:[%s4 + $0x38] sm:$0xff]
        %v1062 = vpack.c.bf16 %v986, %v982
        %v1063 = vpack.c.bf16 %v987, %v983
        %v1064 = vpack.c.bf16 %v988, %v984
        %v1065 = vpack.c.bf16 %v989, %v985
        %v1066 = vpack.c.bf16 %v994, %v990
        %v1067 = vpack.c.bf16 %v995, %v991
        %v1068 = vpack.c.bf16 %v996, %v992
        %v1069 = vpack.c.bf16 %v997, %v993
        %v1070 = vpack.c.bf16 %v1002, %v998
        %v1071 = vpack.c.bf16 %v1003, %v999
        %v1072 = vpack.c.bf16 %v1004, %v1000
        %v1073 = vpack.c.bf16 %v1005, %v1001
        %v1074 = vpack.c.bf16 %v1010, %v1006
        %v1075 = vpack.c.bf16 %v1011, %v1007
        %v1076 = vpack.c.bf16 %v1012, %v1008
        %v1077 = vpack.c.bf16 %v1013, %v1009
        %v1078 = vpack.c.bf16 %v1018, %v1014
        %v1079 = vpack.c.bf16 %v1019, %v1015
        %v1080 = vpack.c.bf16 %v1020, %v1016
        %v1081 = vpack.c.bf16 %v1021, %v1017
        %v1082 = vpack.c.bf16 %v1026, %v1022
        %v1083 = vpack.c.bf16 %v1027, %v1023
        %v1084 = vpack.c.bf16 %v1028, %v1024
        %v1085 = vpack.c.bf16 %v1029, %v1025
        %v1086 = vpack.c.bf16 %v1034, %v1030
        %v1087 = vpack.c.bf16 %v1035, %v1031
        %v1088 = vpack.c.bf16 %v1036, %v1032
        %v1089 = vpack.c.bf16 %v1037, %v1033
        %v1090 = vpack.c.bf16 %v1042, %v1038
        %v1091 = vpack.c.bf16 %v1043, %v1039
        %v1092 = vpack.c.bf16 %v1044, %v1040
        %v1093 = vpack.c.bf16 %v1045, %v1041
        %1095 = vset.pattern.permute.xlu0 0
        %1096 = vperm.xlu0 %1095, %v1054
        %v1097 = vpop.permute.xlu0 %1096
        %1100 = vset.pattern.permute.xlu0 0
        %1101 = vperm.xlu0 %1100, %v1055
        %v1102 = vpop.permute.xlu0 %1101
        %1105 = vset.pattern.permute.xlu0 0
        %1106 = vperm.xlu0 %1105, %v1056
        %v1107 = vpop.permute.xlu0 %1106
        %1110 = vset.pattern.permute.xlu0 0
        %1111 = vperm.xlu0 %1110, %v1057
        %v1112 = vpop.permute.xlu0 %1111
        %1115 = vset.pattern.permute.xlu0 0
        %1116 = vperm.xlu0 %1115, %v1058
        %v1117 = vpop.permute.xlu0 %1116
        %1120 = vset.pattern.permute.xlu0 0
        %1121 = vperm.xlu0 %1120, %v1059
        %v1122 = vpop.permute.xlu0 %1121
        %1125 = vset.pattern.permute.xlu0 0
        %1126 = vperm.xlu0 %1125, %v1060
        %v1127 = vpop.permute.xlu0 %1126
        %1130 = vset.pattern.permute.xlu0 0
        %1131 = vperm.xlu0 %1130, %v1061
        %v1132 = vpop.permute.xlu0 %1131
        %v1142 = vunpack.c.l.b16 %v1046
        %v1143 = vunpack.c.l.b16 %v1047
        %v1144 = vunpack.c.l.b16 %v1048
        %v1145 = vunpack.c.l.b16 %v1049
        %v1146 = vunpack.c.l.b16 %v1050
        %v1147 = vunpack.c.l.b16 %v1051
        %v1148 = vunpack.c.l.b16 %v1052
        %v1149 = vunpack.c.l.b16 %v1053
        %v1150 = vpack.c.b16 %v1143, %v1142
        %v1151 = vpack.c.b16 %v1145, %v1144
        %v1152 = vpack.c.b16 %v1147, %v1146
        %v1153 = vpack.c.b16 %v1149, %v1148
        %1158 = vmatprep.subr.bf16.mxu0 %v1091
        %1159 = vmatpush1.bf16.msra.mxu0 %v1090
        %1160 = vmatprep.subr.bf16.mxu0 %v1087
        %1161 = vmatpush1.bf16.msra.mxu0 %v1086
        %1162 = vmatprep.subr.bf16.mxu0 %v1083
        %1163 = vmatpush1.bf16.msra.mxu0 %v1082
        %1164 = vmatprep.subr.bf16.mxu0 %v1079
        %1165 = vmatpush1.bf16.msra.mxu0 %v1078
        %1166 = vmatprep.subr.bf16.mxu0 %v1075
        %1167 = vmatpush1.bf16.msra.mxu0 %v1074
        %1168 = vmatprep.subr.bf16.mxu0 %v1071
        %1169 = vmatpush1.bf16.msra.mxu0 %v1070
        %1170 = vmatprep.subr.bf16.mxu0 %v1067
        %1171 = vmatpush1.bf16.msra.mxu0 %v1066
        %1172 = vmatprep.subr.bf16.mxu0 %v1063
        %1173 = vmatpush1.bf16.msra.mxu0 %v1062
        %1174 = vmatprep.subr.bf16.mxu0 0
        %1175 = vmatpush2.bf16.msra.mxu0 0
        %1176 = vmatprep.subr.bf16.mxu0 0
        %1177 = vmatpush2.bf16.msra.mxu0 0
        %1178 = vmatprep.subr.bf16.mxu0 0
        %1179 = vmatpush2.bf16.msra.mxu0 0
        %1180 = vmatprep.subr.bf16.mxu0 0
        %1181 = vmatpush2.bf16.msra.mxu0 0
        %1182 = vmatprep.subr.bf16.mxu0 0
        %1183 = vmatpush2.bf16.msra.mxu0 0
        %1184 = vmatprep.subr.bf16.mxu0 0
        %1185 = vmatpush2.bf16.msra.mxu0 0
        %1186 = vmatprep.subr.bf16.mxu0 0
        %1187 = vmatpush2.bf16.msra.mxu0 0
        %1188 = vmatprep.subr.bf16.mxu0 0
        %1189 = vmatpush2.bf16.msra.mxu0 0
        %1190 = vmatprep.mubr.bf16.mxu0 0
        %1191 = vmatmul.mubr.bf16.gmra.mxu0 %v1150
        %v1192 = vpop.f32.mrf.mxu0
        %v1193 = vadd.f32 %v1097, %v1192
        %v1194 = vpop.f32.mrf.mxu0
        %v1195 = vadd.f32 %v1097, %v1194
        %v1196 = vpop.f32.mrf.mxu0
        %v1197 = vadd.f32 %v1102, %v1196
        %v1198 = vpop.f32.mrf.mxu0
        %v1199 = vadd.f32 %v1102, %v1198
        %1200 = vmatprep.mubr.bf16.mxu0 0
        %1201 = vmatmul.mubr.bf16.gmra.mxu0 %v1151
        %v1202 = vpop.f32.mrf.mxu0
        %v1203 = vadd.f32 %v1107, %v1202
        %v1204 = vpop.f32.mrf.mxu0
        %v1205 = vadd.f32 %v1107, %v1204
        %v1206 = vpop.f32.mrf.mxu0
        %v1207 = vadd.f32 %v1112, %v1206
        %v1208 = vpop.f32.mrf.mxu0
        %v1209 = vadd.f32 %v1112, %v1208
        %1210 = vmatprep.mubr.bf16.mxu0 0
        %1211 = vmatmul.mubr.bf16.gmra.mxu0 %v1152
        %v1212 = vpop.f32.mrf.mxu0
        %v1213 = vadd.f32 %v1117, %v1212
        %v1214 = vpop.f32.mrf.mxu0
        %v1215 = vadd.f32 %v1117, %v1214
        %v1216 = vpop.f32.mrf.mxu0
        %v1217 = vadd.f32 %v1122, %v1216
        %v1218 = vpop.f32.mrf.mxu0
        %v1219 = vadd.f32 %v1122, %v1218
        %1220 = vmatprep.mubr.bf16.mxu0 0
        %1221 = vmatmul.mubr.bf16.gmra.mxu0 %v1153
        %v1222 = vpop.f32.mrf.mxu0
        %v1223 = vadd.f32 %v1127, %v1222
        %v1224 = vpop.f32.mrf.mxu0
        %v1225 = vadd.f32 %v1127, %v1224
        %v1226 = vpop.f32.mrf.mxu0
        %v1227 = vadd.f32 %v1132, %v1226
        %v1228 = vpop.f32.mrf.mxu0
        %v1229 = vadd.f32 %v1132, %v1228
        %1230 = vdwg.mxu0
        %1231 = vmatprep.subr.bf16.mxu0 %v1093
        %1232 = vmatpush1.bf16.msra.mxu0 %v1092
        %1233 = vmatprep.subr.bf16.mxu0 %v1089
        %1234 = vmatpush1.bf16.msra.mxu0 %v1088
        %1235 = vmatprep.subr.bf16.mxu0 %v1085
        %1236 = vmatpush1.bf16.msra.mxu0 %v1084
        %1237 = vmatprep.subr.bf16.mxu0 %v1081
        %1238 = vmatpush1.bf16.msra.mxu0 %v1080
        %1239 = vmatprep.subr.bf16.mxu0 %v1077
        %1240 = vmatpush1.bf16.msra.mxu0 %v1076
        %1241 = vmatprep.subr.bf16.mxu0 %v1073
        %1242 = vmatpush1.bf16.msra.mxu0 %v1072
        %1243 = vmatprep.subr.bf16.mxu0 %v1069
        %1244 = vmatpush1.bf16.msra.mxu0 %v1068
        %1245 = vmatprep.subr.bf16.mxu0 %v1065
        %1246 = vmatpush1.bf16.msra.mxu0 %v1064
        %1247 = vmatprep.subr.bf16.mxu0 0
        %1248 = vmatpush2.bf16.msra.mxu0 0
        %1249 = vmatprep.subr.bf16.mxu0 0
        %1250 = vmatpush2.bf16.msra.mxu0 0
        %1251 = vmatprep.subr.bf16.mxu0 0
        %1252 = vmatpush2.bf16.msra.mxu0 0
        %1253 = vmatprep.subr.bf16.mxu0 0
        %1254 = vmatpush2.bf16.msra.mxu0 0
        %1255 = vmatprep.subr.bf16.mxu0 0
        %1256 = vmatpush2.bf16.msra.mxu0 0
        %1257 = vmatprep.subr.bf16.mxu0 0
        %1258 = vmatpush2.bf16.msra.mxu0 0
        %1259 = vmatprep.subr.bf16.mxu0 0
        %1260 = vmatpush2.bf16.msra.mxu0 0
        %1261 = vmatprep.subr.bf16.mxu0 0
        %1262 = vmatpush2.bf16.msra.mxu0 0
        %1263 = vmatprep.mubr.bf16.mxu0 0
        %1264 = vmatmul.mubr.bf16.gmra.mxu0 %v1150
        %v1265 = vpop.f32.mrf.mxu0
        %v1266 = vadd.f32 %v1097, %v1265
        %v1267 = vpop.f32.mrf.mxu0
        %v1268 = vadd.f32 %v1097, %v1267
        %v1269 = vpop.f32.mrf.mxu0
        %v1270 = vadd.f32 %v1102, %v1269
        %v1271 = vpop.f32.mrf.mxu0
        %v1272 = vadd.f32 %v1102, %v1271
        %1273 = vmatprep.mubr.bf16.mxu0 0
        %1274 = vmatmul.mubr.bf16.gmra.mxu0 %v1151
        %v1275 = vpop.f32.mrf.mxu0
        %v1276 = vadd.f32 %v1107, %v1275
        %v1277 = vpop.f32.mrf.mxu0
        %v1278 = vadd.f32 %v1107, %v1277
        %v1279 = vpop.f32.mrf.mxu0
        %v1280 = vadd.f32 %v1112, %v1279
        %v1281 = vpop.f32.mrf.mxu0
        %v1282 = vadd.f32 %v1112, %v1281
        %1283 = vmatprep.mubr.bf16.mxu0 0
        %1284 = vmatmul.mubr.bf16.gmra.mxu0 %v1152
        %v1285 = vpop.f32.mrf.mxu0
        %v1286 = vadd.f32 %v1117, %v1285
        %v1287 = vpop.f32.mrf.mxu0
        %v1288 = vadd.f32 %v1117, %v1287
        %v1289 = vpop.f32.mrf.mxu0
        %v1290 = vadd.f32 %v1122, %v1289
        %v1291 = vpop.f32.mrf.mxu0
        %v1292 = vadd.f32 %v1122, %v1291
        %1293 = vmatprep.mubr.bf16.mxu0 0
        %1294 = vmatmul.mubr.bf16.gmra.mxu0 %v1153
        %v1295 = vpop.f32.mrf.mxu0
        %v1296 = vadd.f32 %v1127, %v1295
        %v1297 = vpop.f32.mrf.mxu0
        %v1298 = vadd.f32 %v1127, %v1297
        %v1299 = vpop.f32.mrf.mxu0
        %v1300 = vadd.f32 %v1132, %v1299
        %v1301 = vpop.f32.mrf.mxu0
        %v1302 = vadd.f32 %v1132, %v1301
        %1303 = vdwg.mxu0
        %v1304 = vmax.f32 %v1193, 0.0
        %v1305 = vmax.f32 %v1195, 0.0
        %v1306 = vmax.f32 %v1266, 0.0
        %v1307 = vmax.f32 %v1268, 0.0
        %v1308 = vmax.f32 %v1197, 0.0
        %v1309 = vmax.f32 %v1199, 0.0
        %v1310 = vmax.f32 %v1270, 0.0
        %v1311 = vmax.f32 %v1272, 0.0
        %v1312 = vmax.f32 %v1203, 0.0
        %v1313 = vmax.f32 %v1205, 0.0
        %v1314 = vmax.f32 %v1276, 0.0
        %v1315 = vmax.f32 %v1278, 0.0
        %v1316 = vmax.f32 %v1207, 0.0
        %v1317 = vmax.f32 %v1209, 0.0
        %v1318 = vmax.f32 %v1280, 0.0
        %v1319 = vmax.f32 %v1282, 0.0
        %v1320 = vmax.f32 %v1213, 0.0
        %v1321 = vmax.f32 %v1215, 0.0
        %v1322 = vmax.f32 %v1286, 0.0
        %v1323 = vmax.f32 %v1288, 0.0
        %v1324 = vmax.f32 %v1217, 0.0
        %v1325 = vmax.f32 %v1219, 0.0
        %v1326 = vmax.f32 %v1290, 0.0
        %v1327 = vmax.f32 %v1292, 0.0
        %v1328 = vmax.f32 %v1223, 0.0
        %v1329 = vmax.f32 %v1225, 0.0
        %v1330 = vmax.f32 %v1296, 0.0
        %v1331 = vmax.f32 %v1298, 0.0
        %v1332 = vmax.f32 %v1227, 0.0
        %v1333 = vmax.f32 %v1229, 0.0
        %v1334 = vmax.f32 %v1300, 0.0
        %v1335 = vmax.f32 %v1302, 0.0
        %v1336 = vld [vmem:[%s5] sm:$0xf]
        %v1337 = vld [vmem:[%s5 + $0x4] sm:$0x3]
        %v1338 = vld [vmem:[%s6] sm:$0xff]
        %v1339 = vld [vmem:[%s6 + $0x8] sm:$0xf]
        %v1340 = vpack.c.bf16 %v1308, %v1304
        %v1341 = vpack.c.bf16 %v1309, %v1305
        %v1342 = vpack.c.bf16 %v1310, %v1306
        %v1343 = vpack.c.bf16 %v1311, %v1307
        %v1344 = vpack.c.bf16 %v1316, %v1312
        %v1345 = vpack.c.bf16 %v1317, %v1313
        %v1346 = vpack.c.bf16 %v1318, %v1314
        %v1347 = vpack.c.bf16 %v1319, %v1315
        %v1348 = vpack.c.bf16 %v1324, %v1320
        %v1349 = vpack.c.bf16 %v1325, %v1321
        %v1350 = vpack.c.bf16 %v1326, %v1322
        %v1351 = vpack.c.bf16 %v1327, %v1323
        %v1352 = vpack.c.bf16 %v1332, %v1328
        %v1353 = vpack.c.bf16 %v1333, %v1329
        %v1354 = vpack.c.bf16 %v1334, %v1330
        %v1355 = vpack.c.bf16 %v1335, %v1331
        %1357 = vset.pattern.permute.xlu0 0
        %1358 = vperm.xlu0 %1357, %v1338
        %v1359 = vpop.permute.xlu0 %1358
        %1362 = vset.pattern.permute.xlu0 0
        %1363 = vperm.xlu0 %1362, %v1339
        %v1364 = vpop.permute.xlu0 %1363
        %v1368 = vunpack.c.l.b16 %v1336
        %v1369 = vunpack.c.l.b16 %v1337
        %v1370 = vpack.c.b16 %v1369, %v1368
        %vm1371 = vcmask 523264
        %v1373 = vsel %vm1371, %v1370, 0
        %1375 = vmatprep.subr.bf16.mxu0 0
        %1376 = vmatpush1.bf16.msra.mxu0 0
        %1377 = vmatprep.subr.bf16.mxu0 0
        %1378 = vmatpush1.bf16.msra.mxu0 0
        %1379 = vmatprep.subr.bf16.mxu0 0
        %1380 = vmatpush1.bf16.msra.mxu0 0
        %1381 = vmatprep.subr.bf16.mxu0 0
        %1382 = vmatpush1.bf16.msra.mxu0 0
        %1383 = vmatprep.subr.bf16.mxu0 %v1353
        %1384 = vmatpush1.bf16.msra.mxu0 %v1352
        %1385 = vmatprep.subr.bf16.mxu0 %v1349
        %1386 = vmatpush1.bf16.msra.mxu0 %v1348
        %1387 = vmatprep.subr.bf16.mxu0 %v1345
        %1388 = vmatpush1.bf16.msra.mxu0 %v1344
        %1389 = vmatprep.subr.bf16.mxu0 %v1341
        %1390 = vmatpush1.bf16.msra.mxu0 %v1340
        %1391 = vmatprep.subr.bf16.mxu0 0
        %1392 = vmatpush2.bf16.msra.mxu0 0
        %1393 = vmatprep.subr.bf16.mxu0 0
        %1394 = vmatpush2.bf16.msra.mxu0 0
        %1395 = vmatprep.subr.bf16.mxu0 0
        %1396 = vmatpush2.bf16.msra.mxu0 0
        %1397 = vmatprep.subr.bf16.mxu0 0
        %1398 = vmatpush2.bf16.msra.mxu0 0
        %1399 = vmatprep.subr.bf16.mxu0 0
        %1400 = vmatpush2.bf16.msra.mxu0 0
        %1401 = vmatprep.subr.bf16.mxu0 0
        %1402 = vmatpush2.bf16.msra.mxu0 0
        %1403 = vmatprep.subr.bf16.mxu0 0
        %1404 = vmatpush2.bf16.msra.mxu0 0
        %1405 = vmatprep.subr.bf16.mxu0 0
        %1406 = vmatpush2.bf16.msra.mxu0 0
        %1407 = vmatprep.mubr.bf16.mxu0 0
        %1408 = vmatmul.mubr.bf16.gmra.mxu0 %v1373
        %v1409 = vpop.f32.mrf.mxu0
        %v1410 = vadd.f32 %v1359, %v1409
        %v1411 = vpop.f32.mrf.mxu0
        %v1412 = vadd.f32 %v1359, %v1411
        %v1413 = vpop.f32.mrf.mxu0
        %v1414 = vadd.f32 %v1364, %v1413
        %v1415 = vpop.f32.mrf.mxu0
        %v1416 = vadd.f32 %v1364, %v1415
        %1417 = vdwg.mxu0
        %1418 = vmatprep.subr.bf16.mxu0 0
        %1419 = vmatpush1.bf16.msra.mxu0 0
        %1420 = vmatprep.subr.bf16.mxu0 0
        %1421 = vmatpush1.bf16.msra.mxu0 0
        %1422 = vmatprep.subr.bf16.mxu0 0
        %1423 = vmatpush1.bf16.msra.mxu0 0
        %1424 = vmatprep.subr.bf16.mxu0 0
        %1425 = vmatpush1.bf16.msra.mxu0 0
        %1426 = vmatprep.subr.bf16.mxu0 %v1355
        %1427 = vmatpush1.bf16.msra.mxu0 %v1354
        %1428 = vmatprep.subr.bf16.mxu0 %v1351
        %1429 = vmatpush1.bf16.msra.mxu0 %v1350
        %1430 = vmatprep.subr.bf16.mxu0 %v1347
        %1431 = vmatpush1.bf16.msra.mxu0 %v1346
        %1432 = vmatprep.subr.bf16.mxu0 %v1343
        %1433 = vmatpush1.bf16.msra.mxu0 %v1342
        %1434 = vmatprep.subr.bf16.mxu0 0
        %1435 = vmatpush2.bf16.msra.mxu0 0
        %1436 = vmatprep.subr.bf16.mxu0 0
        %1437 = vmatpush2.bf16.msra.mxu0 0
        %1438 = vmatprep.subr.bf16.mxu0 0
        %1439 = vmatpush2.bf16.msra.mxu0 0
        %1440 = vmatprep.subr.bf16.mxu0 0
        %1441 = vmatpush2.bf16.msra.mxu0 0
        %1442 = vmatprep.subr.bf16.mxu0 0
        %1443 = vmatpush2.bf16.msra.mxu0 0
        %1444 = vmatprep.subr.bf16.mxu0 0
        %1445 = vmatpush2.bf16.msra.mxu0 0
        %1446 = vmatprep.subr.bf16.mxu0 0
        %1447 = vmatpush2.bf16.msra.mxu0 0
        %1448 = vmatprep.subr.bf16.mxu0 0
        %1449 = vmatpush2.bf16.msra.mxu0 0
        %1450 = vmatprep.mubr.bf16.mxu0 0
        %1451 = vmatmul.mubr.bf16.gmra.mxu0 %v1373
        %v1452 = vpop.f32.mrf.mxu0
        %v1453 = vadd.f32 %v1359, %v1452
        %v1454 = vpop.f32.mrf.mxu0
        %v1455 = vadd.f32 %v1359, %v1454
        %v1456 = vpop.f32.mrf.mxu0
        %v1457 = vadd.f32 %v1364, %v1456
        %v1458 = vpop.f32.mrf.mxu0
        %v1459 = vadd.f32 %v1364, %v1458
        %1460 = vdwg.mxu0
        %v1461 = vmax.f32 %v1410, 0.0
        %v1462 = vmax.f32 %v1412, 0.0
        %v1463 = vmax.f32 %v1453, 0.0
        %v1464 = vmax.f32 %v1455, 0.0
        %v1465 = vmax.f32 %v1414, 0.0
        %v1466 = vmax.f32 %v1416, 0.0
        %v1467 = vmax.f32 %v1457, 0.0
        %v1468 = vmax.f32 %v1459, 0.0
        %v1469 = vld [vmem:[%s7] sm:$0x7]
        %v1470 = vld [vmem:[%s8] sm:$0x7]
        %1472 = vset.pattern.permute.xlu0 0
        %1473 = vperm.xlu0 %1472, %v1470
        %v1474 = vpop.permute.xlu0 %1473
        %1477 = vset.pattern.permute.xlu0 0
        %1478 = vperm.xlu0 %1477, %v1469
        %v1479 = vpop.permute.xlu0 %1478
        %v1481 = vlaneseq
        %v1482 = vshrl.u32 %v1481, 7
        %v1483 = vsub.s32 0, %v1482
        %v1484 = vrot.slane %v1461, %v1483
        %v1485 = vlaneseq
        %v1486 = vshrl.u32 %v1485, 7
        %v1487 = vsub.s32 0, %v1486
        %v1488 = vrot.slane %v1462, %v1487
        %v1489 = vlaneseq
        %v1490 = vshrl.u32 %v1489, 7
        %v1491 = vsub.s32 0, %v1490
        %v1492 = vrot.slane %v1463, %v1491
        %v1493 = vlaneseq
        %v1494 = vshrl.u32 %v1493, 7
        %v1495 = vsub.s32 0, %v1494
        %v1496 = vrot.slane %v1464, %v1495
        %v1497 = vmul.f32 %v1479, %v1484
        %v1498 = vmul.f32 %v1479, %v1488
        %v1499 = vmul.f32 %v1479, %v1492
        %v1500 = vmul.f32 %v1479, %v1496
        %v1501 = vadd.f32 %v1474, %v1497
        %v1502 = vadd.f32 %v1474, %v1498
        %v1503 = vadd.f32 %v1474, %v1499
        %v1504 = vadd.f32 %v1474, %v1500
        %1505 = vset.pattern.permute.xlu0 1
        %1506 = vperm.xlu0 %1505, %v1469
        %v1507 = vpop.permute.xlu0 %1506
        %v1509 = vlaneseq
        %v1510 = vshrl.u32 %v1509, 7
        %v1511 = vsub.s32 1, %v1510
        %v1512 = vrot.slane %v1461, %v1511
        %v1513 = vlaneseq
        %v1514 = vshrl.u32 %v1513, 7
        %v1515 = vsub.s32 1, %v1514
        %v1516 = vrot.slane %v1462, %v1515
        %v1517 = vlaneseq
        %v1518 = vshrl.u32 %v1517, 7
        %v1519 = vsub.s32 1, %v1518
        %v1520 = vrot.slane %v1463, %v1519
        %v1521 = vlaneseq
        %v1522 = vshrl.u32 %v1521, 7
        %v1523 = vsub.s32 1, %v1522
        %v1524 = vrot.slane %v1464, %v1523
        %v1525 = vmul.f32 %v1507, %v1512
        %v1526 = vmul.f32 %v1507, %v1516
        %v1527 = vmul.f32 %v1507, %v1520
        %v1528 = vmul.f32 %v1507, %v1524
        %v1529 = vadd.f32 %v1501, %v1525
        %v1530 = vadd.f32 %v1502, %v1526
        %v1531 = vadd.f32 %v1503, %v1527
        %v1532 = vadd.f32 %v1504, %v1528
        %1533 = vset.pattern.permute.xlu0 2
        %1534 = vperm.xlu0 %1533, %v1469
        %v1535 = vpop.permute.xlu0 %1534
        %v1537 = vlaneseq
        %v1538 = vshrl.u32 %v1537, 7
        %v1539 = vsub.s32 2, %v1538
        %v1540 = vrot.slane %v1461, %v1539
        %v1541 = vlaneseq
        %v1542 = vshrl.u32 %v1541, 7
        %v1543 = vsub.s32 2, %v1542
        %v1544 = vrot.slane %v1462, %v1543
        %v1545 = vlaneseq
        %v1546 = vshrl.u32 %v1545, 7
        %v1547 = vsub.s32 2, %v1546
        %v1548 = vrot.slane %v1463, %v1547
        %v1549 = vlaneseq
        %v1550 = vshrl.u32 %v1549, 7
        %v1551 = vsub.s32 2, %v1550
        %v1552 = vrot.slane %v1464, %v1551
        %v1553 = vmul.f32 %v1535, %v1540
        %v1554 = vmul.f32 %v1535, %v1544
        %v1555 = vmul.f32 %v1535, %v1548
        %v1556 = vmul.f32 %v1535, %v1552
        %v1557 = vadd.f32 %v1529, %v1553
        %v1558 = vadd.f32 %v1530, %v1554
        %v1559 = vadd.f32 %v1531, %v1555
        %v1560 = vadd.f32 %v1532, %v1556
        %1561 = vset.pattern.permute.xlu0 3
        %1562 = vperm.xlu0 %1561, %v1469
        %v1563 = vpop.permute.xlu0 %1562
        %v1565 = vlaneseq
        %v1566 = vshrl.u32 %v1565, 7
        %v1567 = vsub.s32 3, %v1566
        %v1568 = vrot.slane %v1461, %v1567
        %v1569 = vlaneseq
        %v1570 = vshrl.u32 %v1569, 7
        %v1571 = vsub.s32 3, %v1570
        %v1572 = vrot.slane %v1462, %v1571
        %v1573 = vlaneseq
        %v1574 = vshrl.u32 %v1573, 7
        %v1575 = vsub.s32 3, %v1574
        %v1576 = vrot.slane %v1463, %v1575
        %v1577 = vlaneseq
        %v1578 = vshrl.u32 %v1577, 7
        %v1579 = vsub.s32 3, %v1578
        %v1580 = vrot.slane %v1464, %v1579
        %v1581 = vmul.f32 %v1563, %v1568
        %v1582 = vmul.f32 %v1563, %v1572
        %v1583 = vmul.f32 %v1563, %v1576
        %v1584 = vmul.f32 %v1563, %v1580
        %v1585 = vadd.f32 %v1557, %v1581
        %v1586 = vadd.f32 %v1558, %v1582
        %v1587 = vadd.f32 %v1559, %v1583
        %v1588 = vadd.f32 %v1560, %v1584
        %1589 = vset.pattern.permute.xlu0 4
        %1590 = vperm.xlu0 %1589, %v1469
        %v1591 = vpop.permute.xlu0 %1590
        %v1593 = vlaneseq
        %v1594 = vshrl.u32 %v1593, 7
        %v1595 = vsub.s32 4, %v1594
        %v1596 = vrot.slane %v1461, %v1595
        %v1597 = vlaneseq
        %v1598 = vshrl.u32 %v1597, 7
        %v1599 = vsub.s32 4, %v1598
        %v1600 = vrot.slane %v1462, %v1599
        %v1601 = vlaneseq
        %v1602 = vshrl.u32 %v1601, 7
        %v1603 = vsub.s32 4, %v1602
        %v1604 = vrot.slane %v1463, %v1603
        %v1605 = vlaneseq
        %v1606 = vshrl.u32 %v1605, 7
        %v1607 = vsub.s32 4, %v1606
        %v1608 = vrot.slane %v1464, %v1607
        %v1609 = vmul.f32 %v1591, %v1596
        %v1610 = vmul.f32 %v1591, %v1600
        %v1611 = vmul.f32 %v1591, %v1604
        %v1612 = vmul.f32 %v1591, %v1608
        %v1613 = vadd.f32 %v1585, %v1609
        %v1614 = vadd.f32 %v1586, %v1610
        %v1615 = vadd.f32 %v1587, %v1611
        %v1616 = vadd.f32 %v1588, %v1612
        %1617 = vset.pattern.permute.xlu0 5
        %1618 = vperm.xlu0 %1617, %v1469
        %v1619 = vpop.permute.xlu0 %1618
        %v1621 = vlaneseq
        %v1622 = vshrl.u32 %v1621, 7
        %v1623 = vsub.s32 5, %v1622
        %v1624 = vrot.slane %v1461, %v1623
        %v1625 = vlaneseq
        %v1626 = vshrl.u32 %v1625, 7
        %v1627 = vsub.s32 5, %v1626
        %v1628 = vrot.slane %v1462, %v1627
        %v1629 = vlaneseq
        %v1630 = vshrl.u32 %v1629, 7
        %v1631 = vsub.s32 5, %v1630
        %v1632 = vrot.slane %v1463, %v1631
        %v1633 = vlaneseq
        %v1634 = vshrl.u32 %v1633, 7
        %v1635 = vsub.s32 5, %v1634
        %v1636 = vrot.slane %v1464, %v1635
        %v1637 = vmul.f32 %v1619, %v1624
        %v1638 = vmul.f32 %v1619, %v1628
        %v1639 = vmul.f32 %v1619, %v1632
        %v1640 = vmul.f32 %v1619, %v1636
        %v1641 = vadd.f32 %v1613, %v1637
        %v1642 = vadd.f32 %v1614, %v1638
        %v1643 = vadd.f32 %v1615, %v1639
        %v1644 = vadd.f32 %v1616, %v1640
        %1645 = vset.pattern.permute.xlu0 6
        %1646 = vperm.xlu0 %1645, %v1469
        %v1647 = vpop.permute.xlu0 %1646
        %v1649 = vlaneseq
        %v1650 = vshrl.u32 %v1649, 7
        %v1651 = vsub.s32 6, %v1650
        %v1652 = vrot.slane %v1461, %v1651
        %v1653 = vlaneseq
        %v1654 = vshrl.u32 %v1653, 7
        %v1655 = vsub.s32 6, %v1654
        %v1656 = vrot.slane %v1462, %v1655
        %v1657 = vlaneseq
        %v1658 = vshrl.u32 %v1657, 7
        %v1659 = vsub.s32 6, %v1658
        %v1660 = vrot.slane %v1463, %v1659
        %v1661 = vlaneseq
        %v1662 = vshrl.u32 %v1661, 7
        %v1663 = vsub.s32 6, %v1662
        %v1664 = vrot.slane %v1464, %v1663
        %v1665 = vmul.f32 %v1647, %v1652
        %v1666 = vmul.f32 %v1647, %v1656
        %v1667 = vmul.f32 %v1647, %v1660
        %v1668 = vmul.f32 %v1647, %v1664
        %v1669 = vadd.f32 %v1641, %v1665
        %v1670 = vadd.f32 %v1642, %v1666
        %v1671 = vadd.f32 %v1643, %v1667
        %v1672 = vadd.f32 %v1644, %v1668
        %1673 = vset.pattern.permute.xlu0 7
        %1674 = vperm.xlu0 %1673, %v1469
        %v1675 = vpop.permute.xlu0 %1674
        %v1677 = vlaneseq
        %v1678 = vshrl.u32 %v1677, 7
        %v1679 = vsub.s32 7, %v1678
        %v1680 = vrot.slane %v1461, %v1679
        %v1681 = vlaneseq
        %v1682 = vshrl.u32 %v1681, 7
        %v1683 = vsub.s32 7, %v1682
        %v1684 = vrot.slane %v1462, %v1683
        %v1685 = vlaneseq
        %v1686 = vshrl.u32 %v1685, 7
        %v1687 = vsub.s32 7, %v1686
        %v1688 = vrot.slane %v1463, %v1687
        %v1689 = vlaneseq
        %v1690 = vshrl.u32 %v1689, 7
        %v1691 = vsub.s32 7, %v1690
        %v1692 = vrot.slane %v1464, %v1691
        %v1693 = vmul.f32 %v1675, %v1680
        %v1694 = vmul.f32 %v1675, %v1684
        %v1695 = vmul.f32 %v1675, %v1688
        %v1696 = vmul.f32 %v1675, %v1692
        %v1697 = vadd.f32 %v1669, %v1693
        %v1698 = vadd.f32 %v1670, %v1694
        %v1699 = vadd.f32 %v1671, %v1695
        %v1700 = vadd.f32 %v1672, %v1696
        %1701 = vset.pattern.permute.xlu0 8
        %1702 = vperm.xlu0 %1701, %v1469
        %v1703 = vpop.permute.xlu0 %1702
        %v1705 = vlaneseq
        %v1706 = vshrl.u32 %v1705, 7
        %v1707 = vsub.s32 0, %v1706
        %v1708 = vrot.slane %v1465, %v1707
        %v1709 = vlaneseq
        %v1710 = vshrl.u32 %v1709, 7
        %v1711 = vsub.s32 0, %v1710
        %v1712 = vrot.slane %v1466, %v1711
        %v1713 = vlaneseq
        %v1714 = vshrl.u32 %v1713, 7
        %v1715 = vsub.s32 0, %v1714
        %v1716 = vrot.slane %v1467, %v1715
        %v1717 = vlaneseq
        %v1718 = vshrl.u32 %v1717, 7
        %v1719 = vsub.s32 0, %v1718
        %v1720 = vrot.slane %v1468, %v1719
        %v1721 = vmul.f32 %v1703, %v1708
        %v1722 = vmul.f32 %v1703, %v1712
        %v1723 = vmul.f32 %v1703, %v1716
        %v1724 = vmul.f32 %v1703, %v1720
        %v1725 = vadd.f32 %v1697, %v1721
        %v1726 = vadd.f32 %v1698, %v1722
        %v1727 = vadd.f32 %v1699, %v1723
        %v1728 = vadd.f32 %v1700, %v1724
        %1729 = vset.pattern.permute.xlu0 9
        %1730 = vperm.xlu0 %1729, %v1469
        %v1731 = vpop.permute.xlu0 %1730
        %v1733 = vlaneseq
        %v1734 = vshrl.u32 %v1733, 7
        %v1735 = vsub.s32 1, %v1734
        %v1736 = vrot.slane %v1465, %v1735
        %v1737 = vlaneseq
        %v1738 = vshrl.u32 %v1737, 7
        %v1739 = vsub.s32 1, %v1738
        %v1740 = vrot.slane %v1466, %v1739
        %v1741 = vlaneseq
        %v1742 = vshrl.u32 %v1741, 7
        %v1743 = vsub.s32 1, %v1742
        %v1744 = vrot.slane %v1467, %v1743
        %v1745 = vlaneseq
        %v1746 = vshrl.u32 %v1745, 7
        %v1747 = vsub.s32 1, %v1746
        %v1748 = vrot.slane %v1468, %v1747
        %v1749 = vmul.f32 %v1731, %v1736
        %v1750 = vmul.f32 %v1731, %v1740
        %v1751 = vmul.f32 %v1731, %v1744
        %v1752 = vmul.f32 %v1731, %v1748
        %v1753 = vadd.f32 %v1725, %v1749
        %v1754 = vadd.f32 %v1726, %v1750
        %v1755 = vadd.f32 %v1727, %v1751
        %v1756 = vadd.f32 %v1728, %v1752
        %1757 = vset.pattern.permute.xlu0 10
        %1758 = vperm.xlu0 %1757, %v1469
        %v1759 = vpop.permute.xlu0 %1758
        %v1761 = vlaneseq
        %v1762 = vshrl.u32 %v1761, 7
        %v1763 = vsub.s32 2, %v1762
        %v1764 = vrot.slane %v1465, %v1763
        %v1765 = vlaneseq
        %v1766 = vshrl.u32 %v1765, 7
        %v1767 = vsub.s32 2, %v1766
        %v1768 = vrot.slane %v1466, %v1767
        %v1769 = vlaneseq
        %v1770 = vshrl.u32 %v1769, 7
        %v1771 = vsub.s32 2, %v1770
        %v1772 = vrot.slane %v1467, %v1771
        %v1773 = vlaneseq
        %v1774 = vshrl.u32 %v1773, 7
        %v1775 = vsub.s32 2, %v1774
        %v1776 = vrot.slane %v1468, %v1775
        %v1777 = vmul.f32 %v1759, %v1764
        %v1778 = vmul.f32 %v1759, %v1768
        %v1779 = vmul.f32 %v1759, %v1772
        %v1780 = vmul.f32 %v1759, %v1776
        %v1781 = vadd.f32 %v1753, %v1777
        %v1782 = vadd.f32 %v1754, %v1778
        %v1783 = vadd.f32 %v1755, %v1779
        %v1784 = vadd.f32 %v1756, %v1780
        %1785 = vset.pattern.permute.xlu0 11
        %1786 = vperm.xlu0 %1785, %v1469
        %v1787 = vpop.permute.xlu0 %1786
        %v1789 = vlaneseq
        %v1790 = vshrl.u32 %v1789, 7
        %v1791 = vsub.s32 3, %v1790
        %v1792 = vrot.slane %v1465, %v1791
        %v1793 = vlaneseq
        %v1794 = vshrl.u32 %v1793, 7
        %v1795 = vsub.s32 3, %v1794
        %v1796 = vrot.slane %v1466, %v1795
        %v1797 = vlaneseq
        %v1798 = vshrl.u32 %v1797, 7
        %v1799 = vsub.s32 3, %v1798
        %v1800 = vrot.slane %v1467, %v1799
        %v1801 = vlaneseq
        %v1802 = vshrl.u32 %v1801, 7
        %v1803 = vsub.s32 3, %v1802
        %v1804 = vrot.slane %v1468, %v1803
        %v1805 = vmul.f32 %v1787, %v1792
        %v1806 = vmul.f32 %v1787, %v1796
        %v1807 = vmul.f32 %v1787, %v1800
        %v1808 = vmul.f32 %v1787, %v1804
        %v1809 = vadd.f32 %v1781, %v1805
        %v1810 = vadd.f32 %v1782, %v1806
        %v1811 = vadd.f32 %v1783, %v1807
        %v1812 = vadd.f32 %v1784, %v1808
        %v1813 = vld [vmem:[%s9] sm:$0xff]
        %v1814 = vld [vmem:[%s9 + $0x8] sm:$0xf]
        %v1815 = vld [vmem:[%s10] sm:$0xff]
        %v1816 = vld [vmem:[%s10 + $0x8] sm:$0xf]
        %1818 = vset.pattern.permute.xlu0 0
        %1819 = vperm.xlu0 %1818, %v1815
        %v1820 = vpop.permute.xlu0 %1819
        %1823 = vset.pattern.permute.xlu0 0
        %1824 = vperm.xlu0 %1823, %v1816
        %v1825 = vpop.permute.xlu0 %1824
        %1828 = vset.pattern.permute.xlu0 0
        %1829 = vperm.xlu0 %1828, %v1813
        %v1830 = vpop.permute.xlu0 %1829
        %1833 = vset.pattern.permute.xlu0 0
        %1834 = vperm.xlu0 %1833, %v1814
        %v1835 = vpop.permute.xlu0 %1834
        %v1837 = vlaneseq
        %v1838 = vshrl.u32 %v1837, 7
        %v1839 = vsub.s32 0, %v1838
        %v1840 = vrot.slane %v1809, %v1839
        %v1841 = vlaneseq
        %v1842 = vshrl.u32 %v1841, 7
        %v1843 = vsub.s32 0, %v1842
        %v1844 = vrot.slane %v1810, %v1843
        %v1845 = vlaneseq
        %v1846 = vshrl.u32 %v1845, 7
        %v1847 = vsub.s32 0, %v1846
        %v1848 = vrot.slane %v1811, %v1847
        %v1849 = vlaneseq
        %v1850 = vshrl.u32 %v1849, 7
        %v1851 = vsub.s32 0, %v1850
        %v1852 = vrot.slane %v1812, %v1851
        %v1853 = vmul.f32 %v1830, %v1840
        %v1854 = vmul.f32 %v1830, %v1844
        %v1855 = vmul.f32 %v1830, %v1848
        %v1856 = vmul.f32 %v1830, %v1852
        %v1857 = vmul.f32 %v1835, %v1840
        %v1858 = vmul.f32 %v1835, %v1844
        %v1859 = vmul.f32 %v1835, %v1848
        %v1860 = vmul.f32 %v1835, %v1852
        %v1861 = vadd.f32 %v1820, %v1853
        %v1862 = vadd.f32 %v1820, %v1854
        %v1863 = vadd.f32 %v1820, %v1855
        %v1864 = vadd.f32 %v1820, %v1856
        %v1865 = vadd.f32 %v1825, %v1857
        %v1866 = vadd.f32 %v1825, %v1858
        %v1867 = vadd.f32 %v1825, %v1859
        %v1868 = vadd.f32 %v1825, %v1860
        %1869 = vset.pattern.permute.xlu0 1
        %1870 = vperm.xlu0 %1869, %v1813
        %v1871 = vpop.permute.xlu0 %1870
        %1873 = vset.pattern.permute.xlu0 1
        %1874 = vperm.xlu0 %1873, %v1814
        %v1875 = vpop.permute.xlu0 %1874
        %v1877 = vlaneseq
        %v1878 = vshrl.u32 %v1877, 7
        %v1879 = vsub.s32 1, %v1878
        %v1880 = vrot.slane %v1809, %v1879
        %v1881 = vlaneseq
        %v1882 = vshrl.u32 %v1881, 7
        %v1883 = vsub.s32 1, %v1882
        %v1884 = vrot.slane %v1810, %v1883
        %v1885 = vlaneseq
        %v1886 = vshrl.u32 %v1885, 7
        %v1887 = vsub.s32 1, %v1886
        %v1888 = vrot.slane %v1811, %v1887
        %v1889 = vlaneseq
        %v1890 = vshrl.u32 %v1889, 7
        %v1891 = vsub.s32 1, %v1890
        %v1892 = vrot.slane %v1812, %v1891
        %v1893 = vmul.f32 %v1871, %v1880
        %v1894 = vmul.f32 %v1871, %v1884
        %v1895 = vmul.f32 %v1871, %v1888
        %v1896 = vmul.f32 %v1871, %v1892
        %v1897 = vmul.f32 %v1875, %v1880
        %v1898 = vmul.f32 %v1875, %v1884
        %v1899 = vmul.f32 %v1875, %v1888
        %v1900 = vmul.f32 %v1875, %v1892
        %v1901 = vadd.f32 %v1861, %v1893
        %v1902 = vadd.f32 %v1862, %v1894
        %v1903 = vadd.f32 %v1863, %v1895
        %v1904 = vadd.f32 %v1864, %v1896
        %v1905 = vadd.f32 %v1865, %v1897
        %v1906 = vadd.f32 %v1866, %v1898
        %v1907 = vadd.f32 %v1867, %v1899
        %v1908 = vadd.f32 %v1868, %v1900
        %1909 = vset.pattern.permute.xlu0 2
        %1910 = vperm.xlu0 %1909, %v1813
        %v1911 = vpop.permute.xlu0 %1910
        %1913 = vset.pattern.permute.xlu0 2
        %1914 = vperm.xlu0 %1913, %v1814
        %v1915 = vpop.permute.xlu0 %1914
        %v1917 = vlaneseq
        %v1918 = vshrl.u32 %v1917, 7
        %v1919 = vsub.s32 2, %v1918
        %v1920 = vrot.slane %v1809, %v1919
        %v1921 = vlaneseq
        %v1922 = vshrl.u32 %v1921, 7
        %v1923 = vsub.s32 2, %v1922
        %v1924 = vrot.slane %v1810, %v1923
        %v1925 = vlaneseq
        %v1926 = vshrl.u32 %v1925, 7
        %v1927 = vsub.s32 2, %v1926
        %v1928 = vrot.slane %v1811, %v1927
        %v1929 = vlaneseq
        %v1930 = vshrl.u32 %v1929, 7
        %v1931 = vsub.s32 2, %v1930
        %v1932 = vrot.slane %v1812, %v1931
        %v1933 = vmul.f32 %v1911, %v1920
        %v1934 = vmul.f32 %v1911, %v1924
        %v1935 = vmul.f32 %v1911, %v1928
        %v1936 = vmul.f32 %v1911, %v1932
        %v1937 = vmul.f32 %v1915, %v1920
        %v1938 = vmul.f32 %v1915, %v1924
        %v1939 = vmul.f32 %v1915, %v1928
        %v1940 = vmul.f32 %v1915, %v1932
        %v1941 = vadd.f32 %v1901, %v1933
        %v1942 = vadd.f32 %v1902, %v1934
        %v1943 = vadd.f32 %v1903, %v1935
        %v1944 = vadd.f32 %v1904, %v1936
        %v1945 = vadd.f32 %v1905, %v1937
        %v1946 = vadd.f32 %v1906, %v1938
        %v1947 = vadd.f32 %v1907, %v1939
        %v1948 = vadd.f32 %v1908, %v1940
        %v1949 = vmax.f32 %v1941, 0.0
        %v1950 = vmax.f32 %v1942, 0.0
        %v1951 = vmax.f32 %v1943, 0.0
        %v1952 = vmax.f32 %v1944, 0.0
        %v1953 = vmax.f32 %v1945, 0.0
        %v1954 = vmax.f32 %v1946, 0.0
        %v1955 = vmax.f32 %v1947, 0.0
        %v1956 = vmax.f32 %v1948, 0.0
        %v1957 = vld [vmem:[%s11] sm:$0xf]
        %v1958 = vld [vmem:[%s11 + $0x4] sm:$0xf]
        %v1959 = vld [vmem:[%s11 + $0x8] sm:$0xf]
        %v1960 = vld [vmem:[%s11 + $0xc] sm:$0xf]
        %v1961 = vld [vmem:[%s11 + $0x10] sm:$0xf]
        %v1962 = vld [vmem:[%s11 + $0x14] sm:$0xf]
        %v1963 = vld [vmem:[%s11 + $0x18] sm:$0xf]
        %v1964 = vld [vmem:[%s11 + $0x1c] sm:$0xf]
        %v1965 = vld [vmem:[%s12] sm:$0xff]
        %v1966 = vld [vmem:[%s12 + $0x8] sm:$0xff]
        %v1967 = vld [vmem:[%s12 + $0x10] sm:$0xff]
        %v1968 = vld [vmem:[%s12 + $0x18] sm:$0xff]
        %v1969 = vld [vmem:[%s12 + $0x20] sm:$0xff]
        %v1970 = vld [vmem:[%s12 + $0x28] sm:$0xff]
        %v1971 = vld [vmem:[%s12 + $0x30] sm:$0xff]
        %v1972 = vld [vmem:[%s12 + $0x38] sm:$0xff]
        %v1973 = vpack.c.bf16 %v1953, %v1949
        %v1974 = vpack.c.bf16 %v1954, %v1950
        %v1975 = vpack.c.bf16 %v1955, %v1951
        %v1976 = vpack.c.bf16 %v1956, %v1952
        %1978 = vset.pattern.permute.xlu0 0
        %1979 = vperm.xlu0 %1978, %v1965
        %v1980 = vpop.permute.xlu0 %1979
        %1983 = vset.pattern.permute.xlu0 0
        %1984 = vperm.xlu0 %1983, %v1966
        %v1985 = vpop.permute.xlu0 %1984
        %1988 = vset.pattern.permute.xlu0 0
        %1989 = vperm.xlu0 %1988, %v1967
        %v1990 = vpop.permute.xlu0 %1989
        %1993 = vset.pattern.permute.xlu0 0
        %1994 = vperm.xlu0 %1993, %v1968
        %v1995 = vpop.permute.xlu0 %1994
        %1998 = vset.pattern.permute.xlu0 0
        %1999 = vperm.xlu0 %1998, %v1969
        %v2000 = vpop.permute.xlu0 %1999
        %2003 = vset.pattern.permute.xlu0 0
        %2004 = vperm.xlu0 %2003, %v1970
        %v2005 = vpop.permute.xlu0 %2004
        %2008 = vset.pattern.permute.xlu0 0
        %2009 = vperm.xlu0 %2008, %v1971
        %v2010 = vpop.permute.xlu0 %2009
        %2013 = vset.pattern.permute.xlu0 0
        %2014 = vperm.xlu0 %2013, %v1972
        %v2015 = vpop.permute.xlu0 %2014
        %v2025 = vunpack.c.l.b16 %v1957
        %v2026 = vunpack.c.l.b16 %v1958
        %v2027 = vunpack.c.l.b16 %v1959
        %v2028 = vunpack.c.l.b16 %v1960
        %v2029 = vunpack.c.l.b16 %v1961
        %v2030 = vunpack.c.l.b16 %v1962
        %v2031 = vunpack.c.l.b16 %v1963
        %v2032 = vunpack.c.l.b16 %v1964
        %v2033 = vpack.c.b16 %v2026, %v2025
        %v2034 = vpack.c.b16 %v2028, %v2027
        %v2035 = vpack.c.b16 %v2030, %v2029
        %v2036 = vpack.c.b16 %v2032, %v2031
        %vm2037 = vcmask 97280
        %v2039 = vsel %vm2037, %v2033, 0
        %v2042 = vsel %vm2037, %v2034, 0
        %v2045 = vsel %vm2037, %v2035, 0
        %v2048 = vsel %vm2037, %v2036, 0
        %vm2050 = vcmask 1045504
        %v2052 = vsel %vm2050, %v1973, 0
        %v2055 = vsel %vm2050, %v1974, 0
        %v2058 = vsel %vm2050, %v1975, 0
        %v2061 = vsel %vm2050, %v1976, 0
        %2063 = vmatprep.subr.bf16.mxu0 0
        %2064 = vmatpush1.bf16.msra.mxu0 0
        %2065 = vmatprep.subr.bf16.mxu0 0
        %2066 = vmatpush1.bf16.msra.mxu0 0
        %2067 = vmatprep.subr.bf16.mxu0 0
        %2068 = vmatpush1.bf16.msra.mxu0 0
        %2069 = vmatprep.subr.bf16.mxu0 0
        %2070 = vmatpush1.bf16.msra.mxu0 0
        %2071 = vmatprep.subr.bf16.mxu0 0
        %2072 = vmatpush1.bf16.msra.mxu0 0
        %2073 = vmatprep.subr.bf16.mxu0 0
        %2074 = vmatpush1.bf16.msra.mxu0 0
        %2075 = vmatprep.subr.bf16.mxu0 0
        %2076 = vmatpush1.bf16.msra.mxu0 0
        %2077 = vmatprep.subr.bf16.mxu0 %v2055
        %2078 = vmatpush1.bf16.msra.mxu0 %v2052
        %2079 = vmatprep.subr.bf16.mxu0 0
        %2080 = vmatpush2.bf16.msra.mxu0 0
        %2081 = vmatprep.subr.bf16.mxu0 0
        %2082 = vmatpush2.bf16.msra.mxu0 0
        %2083 = vmatprep.subr.bf16.mxu0 0
        %2084 = vmatpush2.bf16.msra.mxu0 0
        %2085 = vmatprep.subr.bf16.mxu0 0
        %2086 = vmatpush2.bf16.msra.mxu0 0
        %2087 = vmatprep.subr.bf16.mxu0 0
        %2088 = vmatpush2.bf16.msra.mxu0 0
        %2089 = vmatprep.subr.bf16.mxu0 0
        %2090 = vmatpush2.bf16.msra.mxu0 0
        %2091 = vmatprep.subr.bf16.mxu0 0
        %2092 = vmatpush2.bf16.msra.mxu0 0
        %2093 = vmatprep.subr.bf16.mxu0 0
        %2094 = vmatpush2.bf16.msra.mxu0 0
        %2095 = vmatprep.mubr.bf16.mxu0 0
        %2096 = vmatmul.mubr.bf16.gmra.mxu0 %v2039
        %v2097 = vpop.f32.mrf.mxu0
        %v2098 = vadd.f32 %v1980, %v2097
        %v2099 = vpop.f32.mrf.mxu0
        %v2100 = vadd.f32 %v1980, %v2099
        %v2101 = vpop.f32.mrf.mxu0
        %v2102 = vadd.f32 %v1985, %v2101
        %v2103 = vpop.f32.mrf.mxu0
        %v2104 = vadd.f32 %v1985, %v2103
        %2105 = vmatprep.mubr.bf16.mxu0 0
        %2106 = vmatmul.mubr.bf16.gmra.mxu0 %v2042
        %v2107 = vpop.f32.mrf.mxu0
        %v2108 = vadd.f32 %v1990, %v2107
        %v2109 = vpop.f32.mrf.mxu0
        %v2110 = vadd.f32 %v1990, %v2109
        %v2111 = vpop.f32.mrf.mxu0
        %v2112 = vadd.f32 %v1995, %v2111
        %v2113 = vpop.f32.mrf.mxu0
        %v2114 = vadd.f32 %v1995, %v2113
        %2115 = vmatprep.mubr.bf16.mxu0 0
        %2116 = vmatmul.mubr.bf16.gmra.mxu0 %v2045
        %v2117 = vpop.f32.mrf.mxu0
        %v2118 = vadd.f32 %v2000, %v2117
        %v2119 = vpop.f32.mrf.mxu0
        %v2120 = vadd.f32 %v2000, %v2119
        %v2121 = vpop.f32.mrf.mxu0
        %v2122 = vadd.f32 %v2005, %v2121
        %v2123 = vpop.f32.mrf.mxu0
        %v2124 = vadd.f32 %v2005, %v2123
        %2125 = vmatprep.mubr.bf16.mxu0 0
        %2126 = vmatmul.mubr.bf16.gmra.mxu0 %v2048
        %v2127 = vpop.f32.mrf.mxu0
        %v2128 = vadd.f32 %v2010, %v2127
        %v2129 = vpop.f32.mrf.mxu0
        %v2130 = vadd.f32 %v2010, %v2129
        %v2131 = vpop.f32.mrf.mxu0
        %v2132 = vadd.f32 %v2015, %v2131
        %v2133 = vpop.f32.mrf.mxu0
        %v2134 = vadd.f32 %v2015, %v2133
        %2135 = vdwg.mxu0
        %2136 = vmatprep.subr.bf16.mxu0 0
        %2137 = vmatpush1.bf16.msra.mxu0 0
        %2138 = vmatprep.subr.bf16.mxu0 0
        %2139 = vmatpush1.bf16.msra.mxu0 0
        %2140 = vmatprep.subr.bf16.mxu0 0
        %2141 = vmatpush1.bf16.msra.mxu0 0
        %2142 = vmatprep.subr.bf16.mxu0 0
        %2143 = vmatpush1.bf16.msra.mxu0 0
        %2144 = vmatprep.subr.bf16.mxu0 0
        %2145 = vmatpush1.bf16.msra.mxu0 0
        %2146 = vmatprep.subr.bf16.mxu0 0
        %2147 = vmatpush1.bf16.msra.mxu0 0
        %2148 = vmatprep.subr.bf16.mxu0 0
        %2149 = vmatpush1.bf16.msra.mxu0 0
        %2150 = vmatprep.subr.bf16.mxu0 %v2061
        %2151 = vmatpush1.bf16.msra.mxu0 %v2058
        %2152 = vmatprep.subr.bf16.mxu0 0
        %2153 = vmatpush2.bf16.msra.mxu0 0
        %2154 = vmatprep.subr.bf16.mxu0 0
        %2155 = vmatpush2.bf16.msra.mxu0 0
        %2156 = vmatprep.subr.bf16.mxu0 0
        %2157 = vmatpush2.bf16.msra.mxu0 0
        %2158 = vmatprep.subr.bf16.mxu0 0
        %2159 = vmatpush2.bf16.msra.mxu0 0
        %2160 = vmatprep.subr.bf16.mxu0 0
        %2161 = vmatpush2.bf16.msra.mxu0 0
        %2162 = vmatprep.subr.bf16.mxu0 0
        %2163 = vmatpush2.bf16.msra.mxu0 0
        %2164 = vmatprep.subr.bf16.mxu0 0
        %2165 = vmatpush2.bf16.msra.mxu0 0
        %2166 = vmatprep.subr.bf16.mxu0 0
        %2167 = vmatpush2.bf16.msra.mxu0 0
        %2168 = vmatprep.mubr.bf16.mxu0 0
        %2169 = vmatmul.mubr.bf16.gmra.mxu0 %v2039
        %v2170 = vpop.f32.mrf.mxu0
        %v2171 = vadd.f32 %v1980, %v2170
        %v2172 = vpop.f32.mrf.mxu0
        %v2173 = vadd.f32 %v1980, %v2172
        %v2174 = vpop.f32.mrf.mxu0
        %v2175 = vadd.f32 %v1985, %v2174
        %v2176 = vpop.f32.mrf.mxu0
        %v2177 = vadd.f32 %v1985, %v2176
        %2178 = vmatprep.mubr.bf16.mxu0 0
        %2179 = vmatmul.mubr.bf16.gmra.mxu0 %v2042
        %v2180 = vpop.f32.mrf.mxu0
        %v2181 = vadd.f32 %v1990, %v2180
        %v2182 = vpop.f32.mrf.mxu0
        %v2183 = vadd.f32 %v1990, %v2182
        %v2184 = vpop.f32.mrf.mxu0
        %v2185 = vadd.f32 %v1995, %v2184
        %v2186 = vpop.f32.mrf.mxu0
        %v2187 = vadd.f32 %v1995, %v2186
        %2188 = vmatprep.mubr.bf16.mxu0 0
        %2189 = vmatmul.mubr.bf16.gmra.mxu0 %v2045
        %v2190 = vpop.f32.mrf.mxu0
        %v2191 = vadd.f32 %v2000, %v2190
        %v2192 = vpop.f32.mrf.mxu0
        %v2193 = vadd.f32 %v2000, %v2192
        %v2194 = vpop.f32.mrf.mxu0
        %v2195 = vadd.f32 %v2005, %v2194
        %v2196 = vpop.f32.mrf.mxu0
        %v2197 = vadd.f32 %v2005, %v2196
        %2198 = vmatprep.mubr.bf16.mxu0 0
        %2199 = vmatmul.mubr.bf16.gmra.mxu0 %v2048
        %v2200 = vpop.f32.mrf.mxu0
        %v2201 = vadd.f32 %v2010, %v2200
        %v2202 = vpop.f32.mrf.mxu0
        %v2203 = vadd.f32 %v2010, %v2202
        %v2204 = vpop.f32.mrf.mxu0
        %v2205 = vadd.f32 %v2015, %v2204
        %v2206 = vpop.f32.mrf.mxu0
        %v2207 = vadd.f32 %v2015, %v2206
        %2208 = vdwg.mxu0
        %v2209 = vmax.f32 %v2098, 0.0
        %v2210 = vmax.f32 %v2100, 0.0
        %v2211 = vmax.f32 %v2171, 0.0
        %v2212 = vmax.f32 %v2173, 0.0
        %v2213 = vmax.f32 %v2102, 0.0
        %v2214 = vmax.f32 %v2104, 0.0
        %v2215 = vmax.f32 %v2175, 0.0
        %v2216 = vmax.f32 %v2177, 0.0
        %v2217 = vmax.f32 %v2108, 0.0
        %v2218 = vmax.f32 %v2110, 0.0
        %v2219 = vmax.f32 %v2181, 0.0
        %v2220 = vmax.f32 %v2183, 0.0
        %v2221 = vmax.f32 %v2112, 0.0
        %v2222 = vmax.f32 %v2114, 0.0
        %v2223 = vmax.f32 %v2185, 0.0
        %v2224 = vmax.f32 %v2187, 0.0
        %v2225 = vmax.f32 %v2118, 0.0
        %v2226 = vmax.f32 %v2120, 0.0
        %v2227 = vmax.f32 %v2191, 0.0
        %v2228 = vmax.f32 %v2193, 0.0
        %v2229 = vmax.f32 %v2122, 0.0
        %v2230 = vmax.f32 %v2124, 0.0
        %v2231 = vmax.f32 %v2195, 0.0
        %v2232 = vmax.f32 %v2197, 0.0
        %v2233 = vmax.f32 %v2128, 0.0
        %v2234 = vmax.f32 %v2130, 0.0
        %v2235 = vmax.f32 %v2201, 0.0
        %v2236 = vmax.f32 %v2203, 0.0
        %v2237 = vmax.f32 %v2132, 0.0
        %v2238 = vmax.f32 %v2134, 0.0
        %v2239 = vmax.f32 %v2205, 0.0
        %v2240 = vmax.f32 %v2207, 0.0
        %v2241 = vld [vmem:[%s13] sm:$0xf]
        %v2242 = vld [vmem:[%s13 + $0x4] sm:$0xf]
        %v2243 = vld [vmem:[%s13 + $0x8] sm:$0xf]
        %v2244 = vld [vmem:[%s13 + $0xc] sm:$0xf]
        %v2245 = vld [vmem:[%s13 + $0x10] sm:$0xf]
        %v2246 = vld [vmem:[%s13 + $0x14] sm:$0xf]
        %v2247 = vld [vmem:[%s13 + $0x18] sm:$0xf]
        %v2248 = vld [vmem:[%s13 + $0x1c] sm:$0xf]
        %v2249 = vld [vmem:[%s13 + $0x20] sm:$0xf]
        %v2250 = vld [vmem:[%s13 + $0x24] sm:$0xf]
        %v2251 = vld [vmem:[%s13 + $0x28] sm:$0xf]
        %v2252 = vld [vmem:[%s13 + $0x2c] sm:$0xf]
        %v2253 = vld [vmem:[%s13 + $0x30] sm:$0xf]
        %v2254 = vld [vmem:[%s13 + $0x34] sm:$0xf]
        %v2255 = vld [vmem:[%s13 + $0x38] sm:$0xf]
        %v2256 = vld [vmem:[%s13 + $0x3c] sm:$0xf]
        %v2257 = vld [vmem:[%s14] sm:$0xff]
        %v2258 = vld [vmem:[%s14 + $0x8] sm:$0xff]
        %v2259 = vld [vmem:[%s14 + $0x10] sm:$0xff]
        %v2260 = vld [vmem:[%s14 + $0x18] sm:$0xff]
        %v2261 = vld [vmem:[%s14 + $0x20] sm:$0xff]
        %v2262 = vld [vmem:[%s14 + $0x28] sm:$0xff]
        %v2263 = vld [vmem:[%s14 + $0x30] sm:$0xff]
        %v2264 = vld [vmem:[%s14 + $0x38] sm:$0xff]
        %v2265 = vld [vmem:[%s14 + $0x40] sm:$0xff]
        %v2266 = vld [vmem:[%s14 + $0x48] sm:$0xff]
        %v2267 = vld [vmem:[%s14 + $0x50] sm:$0xff]
        %v2268 = vld [vmem:[%s14 + $0x58] sm:$0xff]
        %v2269 = vld [vmem:[%s14 + $0x60] sm:$0xff]
        %v2270 = vld [vmem:[%s14 + $0x68] sm:$0xff]
        %v2271 = vld [vmem:[%s14 + $0x70] sm:$0xff]
        %v2272 = vld [vmem:[%s14 + $0x78] sm:$0xff]
        %v2273 = vpack.c.bf16 %v2213, %v2209
        %v2274 = vpack.c.bf16 %v2214, %v2210
        %v2275 = vpack.c.bf16 %v2215, %v2211
        %v2276 = vpack.c.bf16 %v2216, %v2212
        %v2277 = vpack.c.bf16 %v2221, %v2217
        %v2278 = vpack.c.bf16 %v2222, %v2218
        %v2279 = vpack.c.bf16 %v2223, %v2219
        %v2280 = vpack.c.bf16 %v2224, %v2220
        %v2281 = vpack.c.bf16 %v2229, %v2225
        %v2282 = vpack.c.bf16 %v2230, %v2226
        %v2283 = vpack.c.bf16 %v2231, %v2227
        %v2284 = vpack.c.bf16 %v2232, %v2228
        %v2285 = vpack.c.bf16 %v2237, %v2233
        %v2286 = vpack.c.bf16 %v2238, %v2234
        %v2287 = vpack.c.bf16 %v2239, %v2235
        %v2288 = vpack.c.bf16 %v2240, %v2236
        %2290 = vset.pattern.permute.xlu0 0
        %2291 = vperm.xlu0 %2290, %v2257
        %v2292 = vpop.permute.xlu0 %2291
        %2295 = vset.pattern.permute.xlu0 0
        %2296 = vperm.xlu0 %2295, %v2258
        %v2297 = vpop.permute.xlu0 %2296
        %2300 = vset.pattern.permute.xlu0 0
        %2301 = vperm.xlu0 %2300, %v2259
        %v2302 = vpop.permute.xlu0 %2301
        %2305 = vset.pattern.permute.xlu0 0
        %2306 = vperm.xlu0 %2305, %v2260
        %v2307 = vpop.permute.xlu0 %2306
        %2310 = vset.pattern.permute.xlu0 0
        %2311 = vperm.xlu0 %2310, %v2261
        %v2312 = vpop.permute.xlu0 %2311
        %2315 = vset.pattern.permute.xlu0 0
        %2316 = vperm.xlu0 %2315, %v2262
        %v2317 = vpop.permute.xlu0 %2316
        %2320 = vset.pattern.permute.xlu0 0
        %2321 = vperm.xlu0 %2320, %v2263
        %v2322 = vpop.permute.xlu0 %2321
        %2325 = vset.pattern.permute.xlu0 0
        %2326 = vperm.xlu0 %2325, %v2264
        %v2327 = vpop.permute.xlu0 %2326
        %2330 = vset.pattern.permute.xlu0 0
        %2331 = vperm.xlu0 %2330, %v2265
        %v2332 = vpop.permute.xlu0 %2331
        %2335 = vset.pattern.permute.xlu0 0
        %2336 = vperm.xlu0 %2335, %v2266
        %v2337 = vpop.permute.xlu0 %2336
        %2340 = vset.pattern.permute.xlu0 0
        %2341 = vperm.xlu0 %2340, %v2267
        %v2342 = vpop.permute.xlu0 %2341
        %2345 = vset.pattern.permute.xlu0 0
        %2346 = vperm.xlu0 %2345, %v2268
        %v2347 = vpop.permute.xlu0 %2346
        %2350 = vset.pattern.permute.xlu0 0
        %2351 = vperm.xlu0 %2350, %v2269
        %v2352 = vpop.permute.xlu0 %2351
        %2355 = vset.pattern.permute.xlu0 0
        %2356 = vperm.xlu0 %2355, %v2270
        %v2357 = vpop.permute.xlu0 %2356
        %2360 = vset.pattern.permute.xlu0 0
        %2361 = vperm.xlu0 %2360, %v2271
        %v2362 = vpop.permute.xlu0 %2361
        %2365 = vset.pattern.permute.xlu0 0
        %2366 = vperm.xlu0 %2365, %v2272
        %v2367 = vpop.permute.xlu0 %2366
        %v2385 = vunpack.c.l.b16 %v2241
        %v2386 = vunpack.c.l.b16 %v2242
        %v2387 = vunpack.c.l.b16 %v2243
        %v2388 = vunpack.c.l.b16 %v2244
        %v2389 = vunpack.c.l.b16 %v2245
        %v2390 = vunpack.c.l.b16 %v2246
        %v2391 = vunpack.c.l.b16 %v2247
        %v2392 = vunpack.c.l.b16 %v2248
        %v2393 = vunpack.c.l.b16 %v2249
        %v2394 = vunpack.c.l.b16 %v2250
        %v2395 = vunpack.c.l.b16 %v2251
        %v2396 = vunpack.c.l.b16 %v2252
        %v2397 = vunpack.c.l.b16 %v2253
        %v2398 = vunpack.c.l.b16 %v2254
        %v2399 = vunpack.c.l.b16 %v2255
        %v2400 = vunpack.c.l.b16 %v2256
        %v2401 = vpack.c.b16 %v2386, %v2385
        %v2402 = vpack.c.b16 %v2388, %v2387
        %v2403 = vpack.c.b16 %v2390, %v2389
        %v2404 = vpack.c.b16 %v2392, %v2391
        %v2405 = vpack.c.b16 %v2394, %v2393
        %v2406 = vpack.c.b16 %v2396, %v2395
        %v2407 = vpack.c.b16 %v2398, %v2397
        %v2408 = vpack.c.b16 %v2400, %v2399
        %v2410 = vsel %vm1371, %v2401, 0
        %v2413 = vsel %vm1371, %v2402, 0
        %v2416 = vsel %vm1371, %v2403, 0
        %v2419 = vsel %vm1371, %v2404, 0
        %v2422 = vsel %vm1371, %v2405, 0
        %v2425 = vsel %vm1371, %v2406, 0
        %v2428 = vsel %vm1371, %v2407, 0
        %v2431 = vsel %vm1371, %v2408, 0
        %2433 = vmatprep.subr.bf16.mxu0 0
        %2434 = vmatpush1.bf16.msra.mxu0 0
        %2435 = vmatprep.subr.bf16.mxu0 0
        %2436 = vmatpush1.bf16.msra.mxu0 0
        %2437 = vmatprep.subr.bf16.mxu0 0
        %2438 = vmatpush1.bf16.msra.mxu0 0
        %2439 = vmatprep.subr.bf16.mxu0 0
        %2440 = vmatpush1.bf16.msra.mxu0 0
        %2441 = vmatprep.subr.bf16.mxu0 %v2286
        %2442 = vmatpush1.bf16.msra.mxu0 %v2285
        %2443 = vmatprep.subr.bf16.mxu0 %v2282
        %2444 = vmatpush1.bf16.msra.mxu0 %v2281
        %2445 = vmatprep.subr.bf16.mxu0 %v2278
        %2446 = vmatpush1.bf16.msra.mxu0 %v2277
        %2447 = vmatprep.subr.bf16.mxu0 %v2274
        %2448 = vmatpush1.bf16.msra.mxu0 %v2273
        %2449 = vmatprep.subr.bf16.mxu0 0
        %2450 = vmatpush2.bf16.msra.mxu0 0
        %2451 = vmatprep.subr.bf16.mxu0 0
        %2452 = vmatpush2.bf16.msra.mxu0 0
        %2453 = vmatprep.subr.bf16.mxu0 0
        %2454 = vmatpush2.bf16.msra.mxu0 0
        %2455 = vmatprep.subr.bf16.mxu0 0
        %2456 = vmatpush2.bf16.msra.mxu0 0
        %2457 = vmatprep.subr.bf16.mxu0 0
        %2458 = vmatpush2.bf16.msra.mxu0 0
        %2459 = vmatprep.subr.bf16.mxu0 0
        %2460 = vmatpush2.bf16.msra.mxu0 0
        %2461 = vmatprep.subr.bf16.mxu0 0
        %2462 = vmatpush2.bf16.msra.mxu0 0
        %2463 = vmatprep.subr.bf16.mxu0 0
        %2464 = vmatpush2.bf16.msra.mxu0 0
        %2465 = vmatprep.mubr.bf16.mxu0 0
        %2466 = vmatmul.mubr.bf16.gmra.mxu0 %v2410
        %v2467 = vpop.f32.mrf.mxu0
        %v2468 = vadd.f32 %v2292, %v2467
        %v2469 = vpop.f32.mrf.mxu0
        %v2470 = vadd.f32 %v2292, %v2469
        %v2471 = vpop.f32.mrf.mxu0
        %v2472 = vadd.f32 %v2297, %v2471
        %v2473 = vpop.f32.mrf.mxu0
        %v2474 = vadd.f32 %v2297, %v2473
        %2475 = vmatprep.mubr.bf16.mxu0 0
        %2476 = vmatmul.mubr.bf16.gmra.mxu0 %v2413
        %v2477 = vpop.f32.mrf.mxu0
        %v2478 = vadd.f32 %v2302, %v2477
        %v2479 = vpop.f32.mrf.mxu0
        %v2480 = vadd.f32 %v2302, %v2479
        %v2481 = vpop.f32.mrf.mxu0
        %v2482 = vadd.f32 %v2307, %v2481
        %v2483 = vpop.f32.mrf.mxu0
        %v2484 = vadd.f32 %v2307, %v2483
        %2485 = vmatprep.mubr.bf16.mxu0 0
        %2486 = vmatmul.mubr.bf16.gmra.mxu0 %v2416
        %v2487 = vpop.f32.mrf.mxu0
        %v2488 = vadd.f32 %v2312, %v2487
        %v2489 = vpop.f32.mrf.mxu0
        %v2490 = vadd.f32 %v2312, %v2489
        %v2491 = vpop.f32.mrf.mxu0
        %v2492 = vadd.f32 %v2317, %v2491
        %v2493 = vpop.f32.mrf.mxu0
        %v2494 = vadd.f32 %v2317, %v2493
        %2495 = vmatprep.mubr.bf16.mxu0 0
        %2496 = vmatmul.mubr.bf16.gmra.mxu0 %v2419
        %v2497 = vpop.f32.mrf.mxu0
        %v2498 = vadd.f32 %v2322, %v2497
        %v2499 = vpop.f32.mrf.mxu0
        %v2500 = vadd.f32 %v2322, %v2499
        %v2501 = vpop.f32.mrf.mxu0
        %v2502 = vadd.f32 %v2327, %v2501
        %v2503 = vpop.f32.mrf.mxu0
        %v2504 = vadd.f32 %v2327, %v2503
        %2505 = vmatprep.mubr.bf16.mxu0 0
        %2506 = vmatmul.mubr.bf16.gmra.mxu0 %v2422
        %v2507 = vpop.f32.mrf.mxu0
        %v2508 = vadd.f32 %v2332, %v2507
        %v2509 = vpop.f32.mrf.mxu0
        %v2510 = vadd.f32 %v2332, %v2509
        %v2511 = vpop.f32.mrf.mxu0
        %v2512 = vadd.f32 %v2337, %v2511
        %v2513 = vpop.f32.mrf.mxu0
        %v2514 = vadd.f32 %v2337, %v2513
        %2515 = vmatprep.mubr.bf16.mxu0 0
        %2516 = vmatmul.mubr.bf16.gmra.mxu0 %v2425
        %v2517 = vpop.f32.mrf.mxu0
        %v2518 = vadd.f32 %v2342, %v2517
        %v2519 = vpop.f32.mrf.mxu0
        %v2520 = vadd.f32 %v2342, %v2519
        %v2521 = vpop.f32.mrf.mxu0
        %v2522 = vadd.f32 %v2347, %v2521
        %v2523 = vpop.f32.mrf.mxu0
        %v2524 = vadd.f32 %v2347, %v2523
        %2525 = vmatprep.mubr.bf16.mxu0 0
        %2526 = vmatmul.mubr.bf16.gmra.mxu0 %v2428
        %v2527 = vpop.f32.mrf.mxu0
        %v2528 = vadd.f32 %v2352, %v2527
        %v2529 = vpop.f32.mrf.mxu0
        %v2530 = vadd.f32 %v2352, %v2529
        %v2531 = vpop.f32.mrf.mxu0
        %v2532 = vadd.f32 %v2357, %v2531
        %v2533 = vpop.f32.mrf.mxu0
        %v2534 = vadd.f32 %v2357, %v2533
        %2535 = vmatprep.mubr.bf16.mxu0 0
        %2536 = vmatmul.mubr.bf16.gmra.mxu0 %v2431
        %v2537 = vpop.f32.mrf.mxu0
        %v2538 = vadd.f32 %v2362, %v2537
        %v2539 = vpop.f32.mrf.mxu0
        %v2540 = vadd.f32 %v2362, %v2539
        %v2541 = vpop.f32.mrf.mxu0
        %v2542 = vadd.f32 %v2367, %v2541
        %v2543 = vpop.f32.mrf.mxu0
        %v2544 = vadd.f32 %v2367, %v2543
        %2545 = vdwg.mxu0
        %2546 = vmatprep.subr.bf16.mxu0 0
        %2547 = vmatpush1.bf16.msra.mxu0 0
        %2548 = vmatprep.subr.bf16.mxu0 0
        %2549 = vmatpush1.bf16.msra.mxu0 0
        %2550 = vmatprep.subr.bf16.mxu0 0
        %2551 = vmatpush1.bf16.msra.mxu0 0
        %2552 = vmatprep.subr.bf16.mxu0 0
        %2553 = vmatpush1.bf16.msra.mxu0 0
        %2554 = vmatprep.subr.bf16.mxu0 %v2288
        %2555 = vmatpush1.bf16.msra.mxu0 %v2287
        %2556 = vmatprep.subr.bf16.mxu0 %v2284
        %2557 = vmatpush1.bf16.msra.mxu0 %v2283
        %2558 = vmatprep.subr.bf16.mxu0 %v2280
        %2559 = vmatpush1.bf16.msra.mxu0 %v2279
        %2560 = vmatprep.subr.bf16.mxu0 %v2276
        %2561 = vmatpush1.bf16.msra.mxu0 %v2275
        %2562 = vmatprep.subr.bf16.mxu0 0
        %2563 = vmatpush2.bf16.msra.mxu0 0
        %2564 = vmatprep.subr.bf16.mxu0 0
        %2565 = vmatpush2.bf16.msra.mxu0 0
        %2566 = vmatprep.subr.bf16.mxu0 0
        %2567 = vmatpush2.bf16.msra.mxu0 0
        %2568 = vmatprep.subr.bf16.mxu0 0
        %2569 = vmatpush2.bf16.msra.mxu0 0
        %2570 = vmatprep.subr.bf16.mxu0 0
        %2571 = vmatpush2.bf16.msra.mxu0 0
        %2572 = vmatprep.subr.bf16.mxu0 0
        %2573 = vmatpush2.bf16.msra.mxu0 0
        %2574 = vmatprep.subr.bf16.mxu0 0
        %2575 = vmatpush2.bf16.msra.mxu0 0
        %2576 = vmatprep.subr.bf16.mxu0 0
        %2577 = vmatpush2.bf16.msra.mxu0 0
        %2578 = vmatprep.mubr.bf16.mxu0 0
        %2579 = vmatmul.mubr.bf16.gmra.mxu0 %v2410
        %v2580 = vpop.f32.mrf.mxu0
        %v2581 = vadd.f32 %v2292, %v2580
        %v2582 = vpop.f32.mrf.mxu0
        %v2583 = vadd.f32 %v2292, %v2582
        %v2584 = vpop.f32.mrf.mxu0
        %v2585 = vadd.f32 %v2297, %v2584
        %v2586 = vpop.f32.mrf.mxu0
        %v2587 = vadd.f32 %v2297, %v2586
        %2588 = vmatprep.mubr.bf16.mxu0 0
        %2589 = vmatmul.mubr.bf16.gmra.mxu0 %v2413
        %v2590 = vpop.f32.mrf.mxu0
        %v2591 = vadd.f32 %v2302, %v2590
        %v2592 = vpop.f32.mrf.mxu0
        %v2593 = vadd.f32 %v2302, %v2592
        %v2594 = vpop.f32.mrf.mxu0
        %v2595 = vadd.f32 %v2307, %v2594
        %v2596 = vpop.f32.mrf.mxu0
        %v2597 = vadd.f32 %v2307, %v2596
        %2598 = vmatprep.mubr.bf16.mxu0 0
        %2599 = vmatmul.mubr.bf16.gmra.mxu0 %v2416
        %v2600 = vpop.f32.mrf.mxu0
        %v2601 = vadd.f32 %v2312, %v2600
        %v2602 = vpop.f32.mrf.mxu0
        %v2603 = vadd.f32 %v2312, %v2602
        %v2604 = vpop.f32.mrf.mxu0
        %v2605 = vadd.f32 %v2317, %v2604
        %v2606 = vpop.f32.mrf.mxu0
        %v2607 = vadd.f32 %v2317, %v2606
        %2608 = vmatprep.mubr.bf16.mxu0 0
        %2609 = vmatmul.mubr.bf16.gmra.mxu0 %v2419
        %v2610 = vpop.f32.mrf.mxu0
        %v2611 = vadd.f32 %v2322, %v2610
        %v2612 = vpop.f32.mrf.mxu0
        %v2613 = vadd.f32 %v2322, %v2612
        %v2614 = vpop.f32.mrf.mxu0
        %v2615 = vadd.f32 %v2327, %v2614
        %v2616 = vpop.f32.mrf.mxu0
        %v2617 = vadd.f32 %v2327, %v2616
        %2618 = vmatprep.mubr.bf16.mxu0 0
        %2619 = vmatmul.mubr.bf16.gmra.mxu0 %v2422
        %v2620 = vpop.f32.mrf.mxu0
        %v2621 = vadd.f32 %v2332, %v2620
        %v2622 = vpop.f32.mrf.mxu0
        %v2623 = vadd.f32 %v2332, %v2622
        %v2624 = vpop.f32.mrf.mxu0
        %v2625 = vadd.f32 %v2337, %v2624
        %v2626 = vpop.f32.mrf.mxu0
        %v2627 = vadd.f32 %v2337, %v2626
        %2628 = vmatprep.mubr.bf16.mxu0 0
        %2629 = vmatmul.mubr.bf16.gmra.mxu0 %v2425
        %v2630 = vpop.f32.mrf.mxu0
        %v2631 = vadd.f32 %v2342, %v2630
        %v2632 = vpop.f32.mrf.mxu0
        %v2633 = vadd.f32 %v2342, %v2632
        %v2634 = vpop.f32.mrf.mxu0
        %v2635 = vadd.f32 %v2347, %v2634
        %v2636 = vpop.f32.mrf.mxu0
        %v2637 = vadd.f32 %v2347, %v2636
        %2638 = vmatprep.mubr.bf16.mxu0 0
        %2639 = vmatmul.mubr.bf16.gmra.mxu0 %v2428
        %v2640 = vpop.f32.mrf.mxu0
        %v2641 = vadd.f32 %v2352, %v2640
        %v2642 = vpop.f32.mrf.mxu0
        %v2643 = vadd.f32 %v2352, %v2642
        %v2644 = vpop.f32.mrf.mxu0
        %v2645 = vadd.f32 %v2357, %v2644
        %v2646 = vpop.f32.mrf.mxu0
        %v2647 = vadd.f32 %v2357, %v2646
        %2648 = vmatprep.mubr.bf16.mxu0 0
        %2649 = vmatmul.mubr.bf16.gmra.mxu0 %v2431
        %v2650 = vpop.f32.mrf.mxu0
        %v2651 = vadd.f32 %v2362, %v2650
        %v2652 = vpop.f32.mrf.mxu0
        %v2653 = vadd.f32 %v2362, %v2652
        %v2654 = vpop.f32.mrf.mxu0
        %v2655 = vadd.f32 %v2367, %v2654
        %v2656 = vpop.f32.mrf.mxu0
        %v2657 = vadd.f32 %v2367, %v2656
        %2658 = vdwg.mxu0
        %v2659 = vmax.f32 %v2468, 0.0
        %v2660 = vmax.f32 %v2470, 0.0
        %v2661 = vmax.f32 %v2581, 0.0
        %v2662 = vmax.f32 %v2583, 0.0
        %v2663 = vmax.f32 %v2472, 0.0
        %v2664 = vmax.f32 %v2474, 0.0
        %v2665 = vmax.f32 %v2585, 0.0
        %v2666 = vmax.f32 %v2587, 0.0
        %v2667 = vmax.f32 %v2478, 0.0
        %v2668 = vmax.f32 %v2480, 0.0
        %v2669 = vmax.f32 %v2591, 0.0
        %v2670 = vmax.f32 %v2593, 0.0
        %v2671 = vmax.f32 %v2482, 0.0
        %v2672 = vmax.f32 %v2484, 0.0
        %v2673 = vmax.f32 %v2595, 0.0
        %v2674 = vmax.f32 %v2597, 0.0
        %v2675 = vmax.f32 %v2488, 0.0
        %v2676 = vmax.f32 %v2490, 0.0
        %v2677 = vmax.f32 %v2601, 0.0
        %v2678 = vmax.f32 %v2603, 0.0
        %v2679 = vmax.f32 %v2492, 0.0
        %v2680 = vmax.f32 %v2494, 0.0
        %v2681 = vmax.f32 %v2605, 0.0
        %v2682 = vmax.f32 %v2607, 0.0
        %v2683 = vmax.f32 %v2498, 0.0
        %v2684 = vmax.f32 %v2500, 0.0
        %v2685 = vmax.f32 %v2611, 0.0
        %v2686 = vmax.f32 %v2613, 0.0
        %v2687 = vmax.f32 %v2502, 0.0
        %v2688 = vmax.f32 %v2504, 0.0
        %v2689 = vmax.f32 %v2615, 0.0
        %v2690 = vmax.f32 %v2617, 0.0
        %v2691 = vmax.f32 %v2508, 0.0
        %v2692 = vmax.f32 %v2510, 0.0
        %v2693 = vmax.f32 %v2621, 0.0
        %v2694 = vmax.f32 %v2623, 0.0
        %v2695 = vmax.f32 %v2512, 0.0
        %v2696 = vmax.f32 %v2514, 0.0
        %v2697 = vmax.f32 %v2625, 0.0
        %v2698 = vmax.f32 %v2627, 0.0
        %v2699 = vmax.f32 %v2518, 0.0
        %v2700 = vmax.f32 %v2520, 0.0
        %v2701 = vmax.f32 %v2631, 0.0
        %v2702 = vmax.f32 %v2633, 0.0
        %v2703 = vmax.f32 %v2522, 0.0
        %v2704 = vmax.f32 %v2524, 0.0
        %v2705 = vmax.f32 %v2635, 0.0
        %v2706 = vmax.f32 %v2637, 0.0
        %v2707 = vmax.f32 %v2528, 0.0
        %v2708 = vmax.f32 %v2530, 0.0
        %v2709 = vmax.f32 %v2641, 0.0
        %v2710 = vmax.f32 %v2643, 0.0
        %v2711 = vmax.f32 %v2532, 0.0
        %v2712 = vmax.f32 %v2534, 0.0
        %v2713 = vmax.f32 %v2645, 0.0
        %v2714 = vmax.f32 %v2647, 0.0
        %v2715 = vmax.f32 %v2538, 0.0
        %v2716 = vmax.f32 %v2540, 0.0
        %v2717 = vmax.f32 %v2651, 0.0
        %v2718 = vmax.f32 %v2653, 0.0
        %v2719 = vmax.f32 %v2542, 0.0
        %v2720 = vmax.f32 %v2544, 0.0
        %v2721 = vmax.f32 %v2655, 0.0
        %v2722 = vmax.f32 %v2657, 0.0
        %v2723 = vld [vmem:[%s15] sm:$0x3]
        %v2724 = vld [vmem:[%s16] sm:$0x7]
        %v2725 = vpack.c.bf16 %v2663, %v2659
        %v2726 = vpack.c.bf16 %v2664, %v2660
        %v2727 = vpack.c.bf16 %v2665, %v2661
        %v2728 = vpack.c.bf16 %v2666, %v2662
        %v2729 = vpack.c.bf16 %v2671, %v2667
        %v2730 = vpack.c.bf16 %v2672, %v2668
        %v2731 = vpack.c.bf16 %v2673, %v2669
        %v2732 = vpack.c.bf16 %v2674, %v2670
        %v2733 = vpack.c.bf16 %v2679, %v2675
        %v2734 = vpack.c.bf16 %v2680, %v2676
        %v2735 = vpack.c.bf16 %v2681, %v2677
        %v2736 = vpack.c.bf16 %v2682, %v2678
        %v2737 = vpack.c.bf16 %v2687, %v2683
        %v2738 = vpack.c.bf16 %v2688, %v2684
        %v2739 = vpack.c.bf16 %v2689, %v2685
        %v2740 = vpack.c.bf16 %v2690, %v2686
        %v2741 = vpack.c.bf16 %v2695, %v2691
        %v2742 = vpack.c.bf16 %v2696, %v2692
        %v2743 = vpack.c.bf16 %v2697, %v2693
        %v2744 = vpack.c.bf16 %v2698, %v2694
        %v2745 = vpack.c.bf16 %v2703, %v2699
        %v2746 = vpack.c.bf16 %v2704, %v2700
        %v2747 = vpack.c.bf16 %v2705, %v2701
        %v2748 = vpack.c.bf16 %v2706, %v2702
        %v2749 = vpack.c.bf16 %v2711, %v2707
        %v2750 = vpack.c.bf16 %v2712, %v2708
        %v2751 = vpack.c.bf16 %v2713, %v2709
        %v2752 = vpack.c.bf16 %v2714, %v2710
        %v2753 = vpack.c.bf16 %v2719, %v2715
        %v2754 = vpack.c.bf16 %v2720, %v2716
        %v2755 = vpack.c.bf16 %v2721, %v2717
        %v2756 = vpack.c.bf16 %v2722, %v2718
        %2758 = vset.pattern.permute.xlu0 0
        %2759 = vperm.xlu0 %2758, %v2724
        %v2760 = vpop.permute.xlu0 %2759
        %2762 = vmatprep.subr.bf16.mxu0 %v2754
        %2763 = vmatpush1.bf16.msra.mxu0 %v2753
        %2764 = vmatprep.subr.bf16.mxu0 %v2750
        %2765 = vmatpush1.bf16.msra.mxu0 %v2749
        %2766 = vmatprep.subr.bf16.mxu0 %v2746
        %2767 = vmatpush1.bf16.msra.mxu0 %v2745
        %2768 = vmatprep.subr.bf16.mxu0 %v2742
        %2769 = vmatpush1.bf16.msra.mxu0 %v2741
        %2770 = vmatprep.subr.bf16.mxu0 %v2738
        %2771 = vmatpush1.bf16.msra.mxu0 %v2737
        %2772 = vmatprep.subr.bf16.mxu0 %v2734
        %2773 = vmatpush1.bf16.msra.mxu0 %v2733
        %2774 = vmatprep.subr.bf16.mxu0 %v2730
        %2775 = vmatpush1.bf16.msra.mxu0 %v2729
        %2776 = vmatprep.subr.bf16.mxu0 %v2726
        %2777 = vmatpush1.bf16.msra.mxu0 %v2725
        %2778 = vmatprep.subr.bf16.mxu0 0
        %2779 = vmatpush2.bf16.msra.mxu0 0
        %2780 = vmatprep.subr.bf16.mxu0 0
        %2781 = vmatpush2.bf16.msra.mxu0 0
        %2782 = vmatprep.subr.bf16.mxu0 0
        %2783 = vmatpush2.bf16.msra.mxu0 0
        %2784 = vmatprep.subr.bf16.mxu0 0
        %2785 = vmatpush2.bf16.msra.mxu0 0
        %2786 = vmatprep.subr.bf16.mxu0 0
        %2787 = vmatpush2.bf16.msra.mxu0 0
        %2788 = vmatprep.subr.bf16.mxu0 0
        %2789 = vmatpush2.bf16.msra.mxu0 0
        %2790 = vmatprep.subr.bf16.mxu0 0
        %2791 = vmatpush2.bf16.msra.mxu0 0
        %2792 = vmatprep.subr.bf16.mxu0 0
        %2793 = vmatpush2.bf16.msra.mxu0 0
        %2794 = vmatprep.mubr.bf16.mxu0 0
        %2795 = vmatmul.mubr.bf16.gmra.mxu0 %v2723
        %v2796 = vpop.f32.mrf.mxu0
        %v2797 = vadd.f32 %v2760, %v2796
        %v2798 = vpop.f32.mrf.mxu0
        %v2799 = vadd.f32 %v2760, %v2798
        %v2800 = vpop.f32.mrf.mxu0
        %v2801 = vpop.f32.mrf.mxu0
        %2802 = vdwg.mxu0
        %2803 = vmatprep.subr.bf16.mxu0 %v2756
        %2804 = vmatpush1.bf16.msra.mxu0 %v2755
        %2805 = vmatprep.subr.bf16.mxu0 %v2752
        %2806 = vmatpush1.bf16.msra.mxu0 %v2751
        %2807 = vmatprep.subr.bf16.mxu0 %v2748
        %2808 = vmatpush1.bf16.msra.mxu0 %v2747
        %2809 = vmatprep.subr.bf16.mxu0 %v2744
        %2810 = vmatpush1.bf16.msra.mxu0 %v2743
        %2811 = vmatprep.subr.bf16.mxu0 %v2740
        %2812 = vmatpush1.bf16.msra.mxu0 %v2739
        %2813 = vmatprep.subr.bf16.mxu0 %v2736
        %2814 = vmatpush1.bf16.msra.mxu0 %v2735
        %2815 = vmatprep.subr.bf16.mxu0 %v2732
        %2816 = vmatpush1.bf16.msra.mxu0 %v2731
        %2817 = vmatprep.subr.bf16.mxu0 %v2728
        %2818 = vmatpush1.bf16.msra.mxu0 %v2727
        %2819 = vmatprep.subr.bf16.mxu0 0
        %2820 = vmatpush2.bf16.msra.mxu0 0
        %2821 = vmatprep.subr.bf16.mxu0 0
        %2822 = vmatpush2.bf16.msra.mxu0 0
        %2823 = vmatprep.subr.bf16.mxu0 0
        %2824 = vmatpush2.bf16.msra.mxu0 0
        %2825 = vmatprep.subr.bf16.mxu0 0
        %2826 = vmatpush2.bf16.msra.mxu0 0
        %2827 = vmatprep.subr.bf16.mxu0 0
        %2828 = vmatpush2.bf16.msra.mxu0 0
        %2829 = vmatprep.subr.bf16.mxu0 0
        %2830 = vmatpush2.bf16.msra.mxu0 0
        %2831 = vmatprep.subr.bf16.mxu0 0
        %2832 = vmatpush2.bf16.msra.mxu0 0
        %2833 = vmatprep.subr.bf16.mxu0 0
        %2834 = vmatpush2.bf16.msra.mxu0 0
        %2835 = vmatprep.mubr.bf16.mxu0 0
        %2836 = vmatmul.mubr.bf16.gmra.mxu0 %v2723
        %v2837 = vpop.f32.mrf.mxu0
        %v2838 = vadd.f32 %v2760, %v2837
        %v2839 = vpop.f32.mrf.mxu0
        %v2840 = vadd.f32 %v2760, %v2839
        %v2841 = vpop.f32.mrf.mxu0
        %v2842 = vpop.f32.mrf.mxu0
        %2843 = vdwg.mxu0
        %v2844 = vmax.f32 %v2797, 0.0
        %v2845 = vmax.f32 %v2799, 0.0
        %v2846 = vmax.f32 %v2838, 0.0
        %v2847 = vmax.f32 %v2840, 0.0
        %v2852 = vcombine.low %v2844, %v2845
        %v2853 = vcombine.low %v2846, %v2847
        %2856 = vst [vmem:[%s542] sm:$0x77] %v2852
        %2857 = vst [vmem:[%s542 + $0x8] sm:$0x77] %v2853
        %s2858 = sand.u32 %s401, 1
        %s2859 = scalar_lea.sflag [#allocation3], %s2858
        %s2860 = sand.u32 %s401, 1
        %s2861 = smul.addr %s2860, 16
        %s2862 = scalar_lea.vmem [#allocation2], %s2861
        // Predicated region
        $region89: #{tpu_custom_call.1} parent=87 // pred_check
          %p2863 = pneg %p411
        $region90: #{tpu_custom_call.1} parent=87 // pred_check_branch
          %2865 = sbr.rel (%p2863) target = $region92
        $region91: #{tpu_custom_call.1} parent=87 // pred_region
          %s2866 = smul.u32 4, %s31
          %s2868 = ssub.s32 256, 256
          %2869 = vsyncadd %s2859, %s2868
          %s2870 = smul.addr %s2866, 64
          %s2871 = scalar_lea.hbm %s17, %s2870
          %s2873 = sshll.u32 %s2862, 4
          %s2874 = int_to_ptr.vmem [resolvable:$true] %s2873
          %2876 = dma.vmem_to_hbm [thread:$0]  %s2874, 256, %s2871, %s2859
        $region92: #{tpu_custom_call.1} parent=87 // pred_fallthru
          _
      $region88: #{tpu_custom_call.1} parent=5 // pred_fallthru
        _
      %p2877 = scmp.le.s32.totalorder 2, %s26
      // Predicated region
      $region93: #{tpu_custom_call.1} parent=5 // pred_check
        %p2878 = pneg %p2877
      $region94: #{tpu_custom_call.1} parent=5 // pred_check_branch
        %2880 = sbr.rel (%p2878) target = $region96
      $region95: #{tpu_custom_call.1} parent=5 // pred_region
        %s2881 = ssub.s32 %s26, 2
        // Predicated region
        $region97: #{tpu_custom_call.1} parent=95 // pred_check
          %p2882 = pneg %p417
        $region98: #{tpu_custom_call.1} parent=95 // pred_check_branch
          %2884 = sbr.rel (%p2882) target = $region100
        $region99: #{tpu_custom_call.1} parent=95 // pred_region
          %s2885 = sand.u32 %s402, 1
          %s2886 = scalar_lea.sflag [#allocation3], %s2885
          %s2887 = sand.u32 %s402, 1
          %s2888 = smul.addr %s2887, 16
          %s2889 = scalar_lea.vmem [#allocation2], %s2888
          %2890 = dma.done %s2886, 256
        $region100: #{tpu_custom_call.1} parent=95 // pred_fallthru
          _
      $region96: #{tpu_custom_call.1} parent=5 // pred_fallthru
        _
    $region6: #{tpu_custom_call.1} parent=1 // loop_footer
      %s30 = sadd.s32 1, %s26
    $region7: #{tpu_custom_call.1} parent=1 // loop_footer_branch
      %25 = sbr.rel target = $region3
    $region8: #{tpu_custom_call.1} parent=1 // loop_exit
      _
    %2891 = vsyncpa [#allocation3], 1
    %s2892 = scalar_lea.sflag [#allocation3], 1
    %2893 = vsyncpa %s2892, 1

</llo_original>
